<compile_context>
chip_gen: v6e
topology: v6e:2x2x1
jax: 0.10.0
libtpu: 0.0.40
codegen_flags: <defaults>
</compile_context>

<pallas_src>
import functools
import math

import jax
import jax.numpy as jnp
from jax.experimental import pallas as pl
from jax.experimental.pallas import tpu as pltpu


# ----------------------------- kernels --------------------------------------

def _attn_block_kernel(tgt_ref, enc_ref, mask_ref,
                       g_ref, b_ref,
                       wq_ref, bq_ref, wk_ref, bk_ref, wv_ref, bv_ref,
                       wo_ref, bo_ref,
                       o_ref, *, num_heads, scale):
    """Fused: LN1 -> Q/K/V proj -> multi-head cross-attention -> out proj -> +x."""
    x = tgt_ref[0].astype(jnp.float32)        # (Tq, D)  original residual input
    enc = enc_ref[0].astype(jnp.float32)      # (Tk, D)
    mvalid = mask_ref[0, 0] != 0              # (Tq, Tk) bool, hoisted out of head loop

    # ---- LayerNorm (f32 statistics) ----
    mean = jnp.mean(x, axis=-1, keepdims=True)
    var = jnp.mean((x - mean) ** 2, axis=-1, keepdims=True)
    xn = (x - mean) * jax.lax.rsqrt(var + 1e-5)
    xn = xn * g_ref[...] + b_ref[...]

    # ---- Q / K / V projections (bf16 into MXU, f32 accumulate) ----
    xn_b = xn.astype(jnp.bfloat16)
    enc_b = enc.astype(jnp.bfloat16)
    q = jnp.dot(xn_b, wq_ref[...].astype(jnp.bfloat16),
                preferred_element_type=jnp.float32) + bq_ref[...]
    k = jnp.dot(enc_b, wk_ref[...].astype(jnp.bfloat16),
                preferred_element_type=jnp.float32) + bk_ref[...]
    v = jnp.dot(enc_b, wv_ref[...].astype(jnp.bfloat16),
                preferred_element_type=jnp.float32) + bv_ref[...]
    q = q * scale                              # fold 1/sqrt(dh) into q once

    D = q.shape[-1]
    dh = D // num_heads

    # ---- per-head attention, fused head-merge + output projection ----
    # concat_h(attn_h) @ Wo  ==  sum_h attn_h @ Wo[h*dh:(h+1)*dh, :]
    acc = bo_ref[...] + x                      # start from bias + residual (f32)
    for h in range(num_heads):                 # static unroll, no JAX transposes
        lo, hi = h * dh, (h + 1) * dh
        qh = q[:, lo:hi].astype(jnp.bfloat16)  # (Tq, dh)
        kh = k[:, lo:hi].astype(jnp.bfloat16)  # (Tk, dh)
        vh = v[:, lo:hi].astype(jnp.bfloat16)  # (Tk, dh)

        # scores: contract over dh without materializing k^T
        s = jax.lax.dot_general(qh, kh, (((1,), (1,)), ((), ())),
                                preferred_element_type=jnp.float32)   # (Tq, Tk)
        s = jnp.where(mvalid, s, -1e9)         # masked_fill semantics (as in PyTorch)
        s = s - jnp.max(s, axis=-1, keepdims=True)
        p = jnp.exp(s)
        denom = jnp.sum(p, axis=-1, keepdims=True)
        p = p * pl.reciprocal(denom, approx=True)

        oh = jnp.dot(p.astype(jnp.bfloat16), vh,
                     preferred_element_type=jnp.float32)              # (Tq, dh)
        wo_h = wo_ref[lo:hi, :].astype(jnp.bfloat16)                  # (dh, D)
        acc = acc + jnp.dot(oh.astype(jnp.bfloat16), wo_h,
                            preferred_element_type=jnp.float32)

    o_ref[0] = acc.astype(o_ref.dtype)


def _ff_block_kernel(x_ref, g_ref, b_ref, w1_ref, b1_ref, w2_ref, b2_ref, o_ref):
    """Fused: LN2 -> FF1 + ReLU -> FF2 -> +x  (no HBM round-trip of [tm, d_ff])."""
    x = x_ref[...].astype(jnp.float32)         # (tm, D)
    mean = jnp.mean(x, axis=-1, keepdims=True)
    var = jnp.mean((x - mean) ** 2, axis=-1, keepdims=True)
    xn = (x - mean) * jax.lax.rsqrt(var + 1e-5)
    xn = xn * g_ref[...] + b_ref[...]

    h = jnp.dot(xn.astype(jnp.bfloat16), w1_ref[...].astype(jnp.bfloat16),
                preferred_element_type=jnp.float32) + b1_ref[...]
    h = jnp.maximum(h, 0.0)                    # ReLU in f32 (VPU)

    y = jnp.dot(h.astype(jnp.bfloat16), w2_ref[...].astype(jnp.bfloat16),
                preferred_element_type=jnp.float32) + b2_ref[...]
    o_ref[...] = (y + x).astype(o_ref.dtype)


# ------------------------- wrappers / forward --------------------------------

def _pick_tile(m):
    for t in (512, 256, 128, 64, 32, 16, 8):
        if m % t == 0:
            return t
    return m


def custom_decoder_block_forward(params, tgt, encoder_out, tgt_mask, src_tgt_mask,
                                 num_heads):
    # TODO(synk): dropout is identity here (dr_rate=0); stochastic dropout for
    # dr_rate>0 would need pltpu PRNG-based masking.
    B, Tq, D = tgt.shape
    Tk = encoder_out.shape[1]
    dh = D // num_heads
    scale = 1.0 / math.sqrt(dh)

    # ---- Kernel A: residual2 = x + cross_attention(LN1(x), enc, enc, mask) ----
    tgt2 = pl.pallas_call(
        functools.partial(_attn_block_kernel, num_heads=num_heads, scale=scale),
        out_shape=jax.ShapeDtypeStruct((B, Tq, D), tgt.dtype),
        grid=(B,),
        in_specs=[
            pl.BlockSpec((1, Tq, D), lambda b: (b, 0, 0)),        # tgt
            pl.BlockSpec((1, Tk, D), lambda b: (b, 0, 0)),        # encoder_out
            pl.BlockSpec((1, 1, Tq, Tk), lambda b: (b, 0, 0, 0)), # src_tgt_mask
            pl.BlockSpec((1, D), lambda b: (0, 0)),               # ln1_g
            pl.BlockSpec((1, D), lambda b: (0, 0)),               # ln1_b
            pl.BlockSpec((D, D), lambda b: (0, 0)),               # wq
            pl.BlockSpec((1, D), lambda b: (0, 0)),               # bq
            pl.BlockSpec((D, D), lambda b: (0, 0)),               # wk
            pl.BlockSpec((1, D), lambda b: (0, 0)),               # bk
            pl.BlockSpec((D, D), lambda b: (0, 0)),               # wv
            pl.BlockSpec((1, D), lambda b: (0, 0)),               # bv
            pl.BlockSpec((D, D), lambda b: (0, 0)),               # wo
            pl.BlockSpec((1, D), lambda b: (0, 0)),               # bo
        ],
        out_specs=pl.BlockSpec((1, Tq, D), lambda b: (b, 0, 0)),
        compiler_params=pltpu.CompilerParams(
            dimension_semantics=("parallel",)),
    )(tgt, encoder_out, src_tgt_mask,
      params["ln1_g"], params["ln1_b"],
      params["wq"], params["bq"], params["wk"], params["bk"],
      params["wv"], params["bv"], params["wo"], params["bo"])

    # ---- Kernel B: residual3 = x + position_ff(LN2(x)) ----
    M = B * Tq
    DFF = params["w1"].shape[1]
    x2 = tgt2.reshape(M, D)                     # metadata reshape only
    tm = _pick_tile(M)                          # TODO(synk): re-derive tm against
    # 64 MiB VMEM on v7x for large D/d_ff (weights + double-buffered act tiles).

    out = pl.pallas_call(
        _ff_block_kernel,
        out_shape=jax.ShapeDtypeStruct((M, D), tgt.dtype),
        grid=(M // tm,),
        in_specs=[
            pl.BlockSpec((tm, D), lambda i: (i, 0)),              # x rows
            pl.BlockSpec((1, D), lambda i: (0, 0)),               # ln2_g
            pl.BlockSpec((1, D), lambda i: (0, 0)),               # ln2_b
            pl.BlockSpec((D, DFF), lambda i: (0, 0)),             # w1
            pl.BlockSpec((1, DFF), lambda i: (0, 0)),             # b1
            pl.BlockSpec((DFF, D), lambda i: (0, 0)),             # w2
            pl.BlockSpec((1, D), lambda i: (0, 0)),               # b2
        ],
        out_specs=pl.BlockSpec((tm, D), lambda i: (i, 0)),
        compiler_params=pltpu.CompilerParams(
            dimension_semantics=("parallel",)),
    )(x2, params["ln2_g"], params["ln2_b"],
      params["w1"], params["b1"], params["w2"], params["b2"])

    return out.reshape(B, Tq, D)


def init_params(key, d_model, d_ff):
    ks = jax.random.split(key, 6)
    s = 0.02
    f32 = jnp.float32
    return {
        "ln1_g": jnp.ones((1, d_model), f32),
        "ln1_b": jnp.zeros((1, d_model), f32),
        "ln2_g": jnp.ones((1, d_model), f32),
        "ln2_b": jnp.zeros((1, d_model), f32),
        "wq": s * jax.random.normal(ks[0], (d_model, d_model), f32),
        "bq": jnp.zeros((1, d_model), f32),
        "wk": s * jax.random.normal(ks[1], (d_model, d_model), f32),
        "bk": jnp.zeros((1, d_model), f32),
        "wv": s * jax.random.normal(ks[2], (d_model, d_model), f32),
        "bv": jnp.zeros((1, d_model), f32),
        "wo": s * jax.random.normal(ks[3], (d_model, d_model), f32),
        "bo": jnp.zeros((1, d_model), f32),
        "w1": s * jax.random.normal(ks[4], (d_model, d_ff), f32),
        "b1": jnp.zeros((1, d_ff), f32),
        "w2": s * jax.random.normal(ks[5], (d_ff, d_model), f32),
        "b2": jnp.zeros((1, d_model), f32),
    }


if __name__ == "__main__":
    B, Tq, Tk, D, H, DFF = 2, 8, 12, 32, 4, 64

    key = jax.random.PRNGKey(0)
    k_tgt, k_enc, k_par = jax.random.split(key, 3)

    tgt = jax.random.normal(k_tgt, (B, Tq, D), jnp.float32)
    encoder_out = jax.random.normal(k_enc, (B, Tk, D), jnp.float32)

    # src_tgt_mask: pad mask over encoder positions, broadcast over heads & queries
    enc_lens = jnp.array([Tk, Tk - 3], dtype=jnp.int32)
    col = jnp.arange(Tk)[None, None, None, :]                       # [1,1,1,Tk]
    src_tgt_mask = (col < enc_lens[:, None, None, None]).astype(jnp.float32)
    src_tgt_mask = jnp.broadcast_to(src_tgt_mask, (B, 1, Tq, Tk))

    # tgt_mask unused by this block (self_attention is None), kept for signature parity
    tgt_mask = jnp.ones((B, 1, Tq, Tq), jnp.float32)

    params = init_params(k_par, D, DFF)

    out = custom_decoder_block_forward(params, tgt, encoder_out, tgt_mask,
                                       src_tgt_mask, num_heads=H)
    out = jax.block_until_ready(out)
    assert out.shape == (B, Tq, D) and out.dtype == jnp.float32
    assert bool(jnp.all(jnp.isfinite(out)))
    print("KERNEL_OK")
</pallas_src>

<mosaic_0001>
module attributes {stable_mosaic.version = 11 : i64} {
  func.func @_attn_block_kernel(%arg0: i32, %arg1: memref<1x8x32xf32, #tpu.memory_space<vmem>>, %arg2: memref<1x12x32xf32, #tpu.memory_space<vmem>>, %arg3: memref<1x1x8x12xf32, #tpu.memory_space<vmem>>, %arg4: memref<1x32xf32, #tpu.memory_space<vmem>>, %arg5: memref<1x32xf32, #tpu.memory_space<vmem>>, %arg6: memref<32x32xf32, #tpu.memory_space<vmem>>, %arg7: memref<1x32xf32, #tpu.memory_space<vmem>>, %arg8: memref<32x32xf32, #tpu.memory_space<vmem>>, %arg9: memref<1x32xf32, #tpu.memory_space<vmem>>, %arg10: memref<32x32xf32, #tpu.memory_space<vmem>>, %arg11: memref<1x32xf32, #tpu.memory_space<vmem>>, %arg12: memref<32x32xf32, #tpu.memory_space<vmem>>, %arg13: memref<1x32xf32, #tpu.memory_space<vmem>>, %arg14: memref<1x8x32xf32, #tpu.memory_space<vmem>>) attributes {dimension_semantics = [#tpu.dimension_semantics<parallel>], iteration_bounds = array<i64: 2>, scalar_prefetch = 0 : i64, scratch_operands = 0 : i64, tpu.core_type = #tpu.core_type<tc>, window_params = [{transform_indices = @transform_0, window_bounds = array<i64: 1, 8, 32>}, {transform_indices = @transform_1, window_bounds = array<i64: 1, 12, 32>}, {transform_indices = @transform_2, window_bounds = array<i64: 1, 1, 8, 12>}, {pipeline_mode = #tpu.pipeline_mode<synchronous>, transform_indices = @transform_3, window_bounds = array<i64: 1, 32>}, {pipeline_mode = #tpu.pipeline_mode<synchronous>, transform_indices = @transform_4, window_bounds = array<i64: 1, 32>}, {pipeline_mode = #tpu.pipeline_mode<synchronous>, transform_indices = @transform_5, window_bounds = array<i64: 32, 32>}, {pipeline_mode = #tpu.pipeline_mode<synchronous>, transform_indices = @transform_6, window_bounds = array<i64: 1, 32>}, {pipeline_mode = #tpu.pipeline_mode<synchronous>, transform_indices = @transform_7, window_bounds = array<i64: 32, 32>}, {pipeline_mode = #tpu.pipeline_mode<synchronous>, transform_indices = @transform_8, window_bounds = array<i64: 1, 32>}, {pipeline_mode = #tpu.pipeline_mode<synchronous>, transform_indices = @transform_9, window_bounds = array<i64: 32, 32>}, {pipeline_mode = #tpu.pipeline_mode<synchronous>, transform_indices = @transform_10, window_bounds = array<i64: 1, 32>}, {pipeline_mode = #tpu.pipeline_mode<synchronous>, transform_indices = @transform_11, window_bounds = array<i64: 32, 32>}, {pipeline_mode = #tpu.pipeline_mode<synchronous>, transform_indices = @transform_12, window_bounds = array<i64: 1, 32>}, {transform_indices = @transform_13, window_bounds = array<i64: 1, 8, 32>}]} {
    %c0 = arith.constant 0 : index
    %c0_0 = arith.constant 0 : index
    %c0_1 = arith.constant 0 : index
    %0 = vector.load %arg1[%c0, %c0_0, %c0_1] : memref<1x8x32xf32, #tpu.memory_space<vmem>>, vector<1x8x32xf32>
    %1 = vector.shape_cast %0 : vector<1x8x32xf32> to vector<8x32xf32>
    %c0_2 = arith.constant 0 : index
    %c0_3 = arith.constant 0 : index
    %c0_4 = arith.constant 0 : index
    %2 = vector.load %arg2[%c0_2, %c0_3, %c0_4] : memref<1x12x32xf32, #tpu.memory_space<vmem>>, vector<1x12x32xf32>
    %3 = vector.shape_cast %2 : vector<1x12x32xf32> to vector<12x32xf32>
    %c0_5 = arith.constant 0 : index
    %c0_6 = arith.constant 0 : index
    %c0_7 = arith.constant 0 : index
    %c0_8 = arith.constant 0 : index
    %4 = vector.load %arg3[%c0_5, %c0_6, %c0_7, %c0_8] : memref<1x1x8x12xf32, #tpu.memory_space<vmem>>, vector<1x1x8x12xf32>
    %5 = vector.shape_cast %4 : vector<1x1x8x12xf32> to vector<8x12xf32>
    %cst = arith.constant 0.000000e+00 : f32
    %6 = vector.broadcast %cst : f32 to vector<8x12xf32>
    %7 = arith.cmpf one, %5, %6 : vector<8x12xf32>
    %cst_9 = arith.constant dense<0.000000e+00> : vector<8xf32>
    %8 = vector.multi_reduction <add>, %1, %cst_9 [1] : vector<8x32xf32> to vector<8xf32>
    %9 = vector.shape_cast %8 : vector<8xf32> to vector<8x1xf32>
    %cst_10 = arith.constant 3.200000e+01 : f32
    %10 = vector.broadcast %cst_10 : f32 to vector<8x1xf32>
    %11 = arith.divf %9, %10 : vector<8x1xf32>
    %12 = vector.broadcast %11 : vector<8x1xf32> to vector<8x32xf32>
    %13 = arith.subf %1, %12 : vector<8x32xf32>
    %14 = arith.mulf %13, %13 : vector<8x32xf32>
    %cst_11 = arith.constant dense<0.000000e+00> : vector<8xf32>
    %15 = vector.multi_reduction <add>, %14, %cst_11 [1] : vector<8x32xf32> to vector<8xf32>
    %16 = vector.shape_cast %15 : vector<8xf32> to vector<8x1xf32>
    %cst_12 = arith.constant 3.200000e+01 : f32
    %17 = vector.broadcast %cst_12 : f32 to vector<8x1xf32>
    %18 = arith.divf %16, %17 : vector<8x1xf32>
    %19 = vector.broadcast %11 : vector<8x1xf32> to vector<8x32xf32>
    %20 = arith.subf %1, %19 : vector<8x32xf32>
    %cst_13 = arith.constant 9.99999974E-6 : f32
    %21 = vector.broadcast %cst_13 : f32 to vector<8x1xf32>
    %22 = arith.addf %18, %21 : vector<8x1xf32>
    %23 = math.rsqrt %22 : vector<8x1xf32>
    %24 = vector.broadcast %23 : vector<8x1xf32> to vector<8x32xf32>
    %25 = arith.mulf %20, %24 : vector<8x32xf32>
    %c0_14 = arith.constant 0 : index
    %c0_15 = arith.constant 0 : index
    %26 = vector.load %arg4[%c0_14, %c0_15] : memref<1x32xf32, #tpu.memory_space<vmem>>, vector<1x32xf32>
    %27 = vector.broadcast %26 : vector<1x32xf32> to vector<8x32xf32>
    %28 = arith.mulf %25, %27 : vector<8x32xf32>
    %c0_16 = arith.constant 0 : index
    %c0_17 = arith.constant 0 : index
    %29 = vector.load %arg5[%c0_16, %c0_17] : memref<1x32xf32, #tpu.memory_space<vmem>>, vector<1x32xf32>
    %30 = vector.broadcast %29 : vector<1x32xf32> to vector<8x32xf32>
    %31 = arith.addf %28, %30 : vector<8x32xf32>
    %32 = arith.truncf %31 : vector<8x32xf32> to vector<8x32xbf16>
    %33 = arith.truncf %3 : vector<12x32xf32> to vector<12x32xbf16>
    %c0_18 = arith.constant 0 : index
    %c0_19 = arith.constant 0 : index
    %34 = vector.load %arg6[%c0_18, %c0_19] : memref<32x32xf32, #tpu.memory_space<vmem>>, vector<32x32xf32>
    %35 = arith.truncf %34 : vector<32x32xf32> to vector<32x32xbf16>
    %cst_20 = arith.constant dense<0.000000e+00> : vector<8x32xf32>
    %36 = tpu.matmul %32, %35, %cst_20 {dimension_numbers = #tpu.dot_dimension_numbers<[1], [0], [0], [1], [0, 0, 1, 1], [], []>} : vector<8x32xbf16>, vector<32x32xbf16>, vector<8x32xf32> -> vector<8x32xf32>
    %c0_21 = arith.constant 0 : index
    %c0_22 = arith.constant 0 : index
    %37 = vector.load %arg7[%c0_21, %c0_22] : memref<1x32xf32, #tpu.memory_space<vmem>>, vector<1x32xf32>
    %38 = vector.broadcast %37 : vector<1x32xf32> to vector<8x32xf32>
    %39 = arith.addf %36, %38 : vector<8x32xf32>
    %c0_23 = arith.constant 0 : index
    %c0_24 = arith.constant 0 : index
    %40 = vector.load %arg8[%c0_23, %c0_24] : memref<32x32xf32, #tpu.memory_space<vmem>>, vector<32x32xf32>
    %41 = arith.truncf %40 : vector<32x32xf32> to vector<32x32xbf16>
    %cst_25 = arith.constant dense<0.000000e+00> : vector<12x32xf32>
    %42 = tpu.matmul %33, %41, %cst_25 {dimension_numbers = #tpu.dot_dimension_numbers<[1], [0], [0], [1], [0, 0, 1, 1], [], []>} : vector<12x32xbf16>, vector<32x32xbf16>, vector<12x32xf32> -> vector<12x32xf32>
    %c0_26 = arith.constant 0 : index
    %c0_27 = arith.constant 0 : index
    %43 = vector.load %arg9[%c0_26, %c0_27] : memref<1x32xf32, #tpu.memory_space<vmem>>, vector<1x32xf32>
    %44 = vector.broadcast %43 : vector<1x32xf32> to vector<12x32xf32>
    %45 = arith.addf %42, %44 : vector<12x32xf32>
    %c0_28 = arith.constant 0 : index
    %c0_29 = arith.constant 0 : index
    %46 = vector.load %arg10[%c0_28, %c0_29] : memref<32x32xf32, #tpu.memory_space<vmem>>, vector<32x32xf32>
    %47 = arith.truncf %46 : vector<32x32xf32> to vector<32x32xbf16>
    %cst_30 = arith.constant dense<0.000000e+00> : vector<12x32xf32>
    %48 = tpu.matmul %33, %47, %cst_30 {dimension_numbers = #tpu.dot_dimension_numbers<[1], [0], [0], [1], [0, 0, 1, 1], [], []>} : vector<12x32xbf16>, vector<32x32xbf16>, vector<12x32xf32> -> vector<12x32xf32>
    %c0_31 = arith.constant 0 : index
    %c0_32 = arith.constant 0 : index
    %49 = vector.load %arg11[%c0_31, %c0_32] : memref<1x32xf32, #tpu.memory_space<vmem>>, vector<1x32xf32>
    %50 = vector.broadcast %49 : vector<1x32xf32> to vector<12x32xf32>
    %51 = arith.addf %48, %50 : vector<12x32xf32>
    %cst_33 = arith.constant 0.353553385 : f32
    %52 = vector.broadcast %cst_33 : f32 to vector<8x32xf32>
    %53 = arith.mulf %39, %52 : vector<8x32xf32>
    %c0_34 = arith.constant 0 : index
    %c0_35 = arith.constant 0 : index
    %54 = vector.load %arg13[%c0_34, %c0_35] : memref<1x32xf32, #tpu.memory_space<vmem>>, vector<1x32xf32>
    %55 = vector.broadcast %54 : vector<1x32xf32> to vector<8x32xf32>
    %56 = arith.addf %55, %1 : vector<8x32xf32>
    %57 = vector.extract_strided_slice %53 {offsets = [0, 0], sizes = [8, 8], strides = [1, 1]} : vector<8x32xf32> to vector<8x8xf32>
    %58 = arith.truncf %57 : vector<8x8xf32> to vector<8x8xbf16>
    %59 = vector.extract_strided_slice %45 {offsets = [0, 0], sizes = [12, 8], strides = [1, 1]} : vector<12x32xf32> to vector<12x8xf32>
    %60 = arith.truncf %59 : vector<12x8xf32> to vector<12x8xbf16>
    %61 = vector.extract_strided_slice %51 {offsets = [0, 0], sizes = [12, 8], strides = [1, 1]} : vector<12x32xf32> to vector<12x8xf32>
    %62 = arith.truncf %61 : vector<12x8xf32> to vector<12x8xbf16>
    %cst_36 = arith.constant dense<0.000000e+00> : vector<8x12xf32>
    %63 = tpu.matmul %58, %60, %cst_36 {dimension_numbers = #tpu.dot_dimension_numbers<[1], [1], [0], [0], [0, 0, 1, 0], [], []>} : vector<8x8xbf16>, vector<12x8xbf16>, vector<8x12xf32> -> vector<8x12xf32>
    %cst_37 = arith.constant -1.000000e+09 : f32
    %64 = vector.broadcast %cst_37 : f32 to vector<8x12xf32>
    %65 = arith.select %7, %63, %64 : vector<8x12xi1>, vector<8x12xf32>
    %cst_38 = arith.constant dense<0xFF800000> : vector<8xf32>
    %66 = vector.multi_reduction <maximumf>, %65, %cst_38 [1] : vector<8x12xf32> to vector<8xf32>
    %67 = vector.shape_cast %66 : vector<8xf32> to vector<8x1xf32>
    %68 = vector.broadcast %67 : vector<8x1xf32> to vector<8x12xf32>
    %69 = arith.subf %65, %68 : vector<8x12xf32>
    %70 = math.exp %69 : vector<8x12xf32>
    %cst_39 = arith.constant dense<0.000000e+00> : vector<8xf32>
    %71 = vector.multi_reduction <add>, %70, %cst_39 [1] : vector<8x12xf32> to vector<8xf32>
    %72 = vector.shape_cast %71 : vector<8xf32> to vector<8x1xf32>
    %73 = tpu.reciprocal %72 {approx = true} : vector<8x1xf32> -> vector<8x1xf32>
    %74 = vector.broadcast %73 : vector<8x1xf32> to vector<8x12xf32>
    %75 = arith.mulf %70, %74 : vector<8x12xf32>
    %76 = arith.truncf %75 : vector<8x12xf32> to vector<8x12xbf16>
    %cst_40 = arith.constant dense<0.000000e+00> : vector<8x8xf32>
    %77 = tpu.matmul %76, %62, %cst_40 {dimension_numbers = #tpu.dot_dimension_numbers<[1], [0], [0], [1], [0, 0, 1, 1], [], []>} : vector<8x12xbf16>, vector<12x8xbf16>, vector<8x8xf32> -> vector<8x8xf32>
    %c0_41 = arith.constant 0 : index
    %c0_42 = arith.constant 0 : index
    %78 = vector.load %arg12[%c0_41, %c0_42] : memref<32x32xf32, #tpu.memory_space<vmem>>, vector<8x32xf32>
    %79 = arith.truncf %78 : vector<8x32xf32> to vector<8x32xbf16>
    %80 = arith.truncf %77 : vector<8x8xf32> to vector<8x8xbf16>
    %cst_43 = arith.constant dense<0.000000e+00> : vector<8x32xf32>
    %81 = tpu.matmul %80, %79, %cst_43 {dimension_numbers = #tpu.dot_dimension_numbers<[1], [0], [0], [1], [0, 0, 1, 1], [], []>} : vector<8x8xbf16>, vector<8x32xbf16>, vector<8x32xf32> -> vector<8x32xf32>
    %82 = arith.addf %56, %81 : vector<8x32xf32>
    %83 = vector.extract_strided_slice %53 {offsets = [0, 8], sizes = [8, 8], strides = [1, 1]} : vector<8x32xf32> to vector<8x8xf32>
    %84 = arith.truncf %83 : vector<8x8xf32> to vector<8x8xbf16>
    %85 = vector.extract_strided_slice %45 {offsets = [0, 8], sizes = [12, 8], strides = [1, 1]} : vector<12x32xf32> to vector<12x8xf32>
    %86 = arith.truncf %85 : vector<12x8xf32> to vector<12x8xbf16>
    %87 = vector.extract_strided_slice %51 {offsets = [0, 8], sizes = [12, 8], strides = [1, 1]} : vector<12x32xf32> to vector<12x8xf32>
    %88 = arith.truncf %87 : vector<12x8xf32> to vector<12x8xbf16>
    %cst_44 = arith.constant dense<0.000000e+00> : vector<8x12xf32>
    %89 = tpu.matmul %84, %86, %cst_44 {dimension_numbers = #tpu.dot_dimension_numbers<[1], [1], [0], [0], [0, 0, 1, 0], [], []>} : vector<8x8xbf16>, vector<12x8xbf16>, vector<8x12xf32> -> vector<8x12xf32>
    %cst_45 = arith.constant -1.000000e+09 : f32
    %90 = vector.broadcast %cst_45 : f32 to vector<8x12xf32>
    %91 = arith.select %7, %89, %90 : vector<8x12xi1>, vector<8x12xf32>
    %cst_46 = arith.constant dense<0xFF800000> : vector<8xf32>
    %92 = vector.multi_reduction <maximumf>, %91, %cst_46 [1] : vector<8x12xf32> to vector<8xf32>
    %93 = vector.shape_cast %92 : vector<8xf32> to vector<8x1xf32>
    %94 = vector.broadcast %93 : vector<8x1xf32> to vector<8x12xf32>
    %95 = arith.subf %91, %94 : vector<8x12xf32>
    %96 = math.exp %95 : vector<8x12xf32>
    %cst_47 = arith.constant dense<0.000000e+00> : vector<8xf32>
    %97 = vector.multi_reduction <add>, %96, %cst_47 [1] : vector<8x12xf32> to vector<8xf32>
    %98 = vector.shape_cast %97 : vector<8xf32> to vector<8x1xf32>
    %99 = tpu.reciprocal %98 {approx = true} : vector<8x1xf32> -> vector<8x1xf32>
    %100 = vector.broadcast %99 : vector<8x1xf32> to vector<8x12xf32>
    %101 = arith.mulf %96, %100 : vector<8x12xf32>
    %102 = arith.truncf %101 : vector<8x12xf32> to vector<8x12xbf16>
    %cst_48 = arith.constant dense<0.000000e+00> : vector<8x8xf32>
    %103 = tpu.matmul %102, %88, %cst_48 {dimension_numbers = #tpu.dot_dimension_numbers<[1], [0], [0], [1], [0, 0, 1, 1], [], []>} : vector<8x12xbf16>, vector<12x8xbf16>, vector<8x8xf32> -> vector<8x8xf32>
    %c8 = arith.constant 8 : index
    %c0_49 = arith.constant 0 : index
    %104 = vector.load %arg12[%c8, %c0_49] : memref<32x32xf32, #tpu.memory_space<vmem>>, vector<8x32xf32>
    %105 = arith.truncf %104 : vector<8x32xf32> to vector<8x32xbf16>
    %106 = arith.truncf %103 : vector<8x8xf32> to vector<8x8xbf16>
    %cst_50 = arith.constant dense<0.000000e+00> : vector<8x32xf32>
    %107 = tpu.matmul %106, %105, %cst_50 {dimension_numbers = #tpu.dot_dimension_numbers<[1], [0], [0], [1], [0, 0, 1, 1], [], []>} : vector<8x8xbf16>, vector<8x32xbf16>, vector<8x32xf32> -> vector<8x32xf32>
    %108 = arith.addf %82, %107 : vector<8x32xf32>
    %109 = vector.extract_strided_slice %53 {offsets = [0, 16], sizes = [8, 8], strides = [1, 1]} : vector<8x32xf32> to vector<8x8xf32>
    %110 = arith.truncf %109 : vector<8x8xf32> to vector<8x8xbf16>
    %111 = vector.extract_strided_slice %45 {offsets = [0, 16], sizes = [12, 8], strides = [1, 1]} : vector<12x32xf32> to vector<12x8xf32>
    %112 = arith.truncf %111 : vector<12x8xf32> to vector<12x8xbf16>
    %113 = vector.extract_strided_slice %51 {offsets = [0, 16], sizes = [12, 8], strides = [1, 1]} : vector<12x32xf32> to vector<12x8xf32>
    %114 = arith.truncf %113 : vector<12x8xf32> to vector<12x8xbf16>
    %cst_51 = arith.constant dense<0.000000e+00> : vector<8x12xf32>
    %115 = tpu.matmul %110, %112, %cst_51 {dimension_numbers = #tpu.dot_dimension_numbers<[1], [1], [0], [0], [0, 0, 1, 0], [], []>} : vector<8x8xbf16>, vector<12x8xbf16>, vector<8x12xf32> -> vector<8x12xf32>
    %cst_52 = arith.constant -1.000000e+09 : f32
    %116 = vector.broadcast %cst_52 : f32 to vector<8x12xf32>
    %117 = arith.select %7, %115, %116 : vector<8x12xi1>, vector<8x12xf32>
    %cst_53 = arith.constant dense<0xFF800000> : vector<8xf32>
    %118 = vector.multi_reduction <maximumf>, %117, %cst_53 [1] : vector<8x12xf32> to vector<8xf32>
    %119 = vector.shape_cast %118 : vector<8xf32> to vector<8x1xf32>
    %120 = vector.broadcast %119 : vector<8x1xf32> to vector<8x12xf32>
    %121 = arith.subf %117, %120 : vector<8x12xf32>
    %122 = math.exp %121 : vector<8x12xf32>
    %cst_54 = arith.constant dense<0.000000e+00> : vector<8xf32>
    %123 = vector.multi_reduction <add>, %122, %cst_54 [1] : vector<8x12xf32> to vector<8xf32>
    %124 = vector.shape_cast %123 : vector<8xf32> to vector<8x1xf32>
    %125 = tpu.reciprocal %124 {approx = true} : vector<8x1xf32> -> vector<8x1xf32>
    %126 = vector.broadcast %125 : vector<8x1xf32> to vector<8x12xf32>
    %127 = arith.mulf %122, %126 : vector<8x12xf32>
    %128 = arith.truncf %127 : vector<8x12xf32> to vector<8x12xbf16>
    %cst_55 = arith.constant dense<0.000000e+00> : vector<8x8xf32>
    %129 = tpu.matmul %128, %114, %cst_55 {dimension_numbers = #tpu.dot_dimension_numbers<[1], [0], [0], [1], [0, 0, 1, 1], [], []>} : vector<8x12xbf16>, vector<12x8xbf16>, vector<8x8xf32> -> vector<8x8xf32>
    %c16 = arith.constant 16 : index
    %c0_56 = arith.constant 0 : index
    %130 = vector.load %arg12[%c16, %c0_56] : memref<32x32xf32, #tpu.memory_space<vmem>>, vector<8x32xf32>
    %131 = arith.truncf %130 : vector<8x32xf32> to vector<8x32xbf16>
    %132 = arith.truncf %129 : vector<8x8xf32> to vector<8x8xbf16>
    %cst_57 = arith.constant dense<0.000000e+00> : vector<8x32xf32>
    %133 = tpu.matmul %132, %131, %cst_57 {dimension_numbers = #tpu.dot_dimension_numbers<[1], [0], [0], [1], [0, 0, 1, 1], [], []>} : vector<8x8xbf16>, vector<8x32xbf16>, vector<8x32xf32> -> vector<8x32xf32>
    %134 = arith.addf %108, %133 : vector<8x32xf32>
    %135 = vector.extract_strided_slice %53 {offsets = [0, 24], sizes = [8, 8], strides = [1, 1]} : vector<8x32xf32> to vector<8x8xf32>
    %136 = arith.truncf %135 : vector<8x8xf32> to vector<8x8xbf16>
    %137 = vector.extract_strided_slice %45 {offsets = [0, 24], sizes = [12, 8], strides = [1, 1]} : vector<12x32xf32> to vector<12x8xf32>
    %138 = arith.truncf %137 : vector<12x8xf32> to vector<12x8xbf16>
    %139 = vector.extract_strided_slice %51 {offsets = [0, 24], sizes = [12, 8], strides = [1, 1]} : vector<12x32xf32> to vector<12x8xf32>
    %140 = arith.truncf %139 : vector<12x8xf32> to vector<12x8xbf16>
    %cst_58 = arith.constant dense<0.000000e+00> : vector<8x12xf32>
    %141 = tpu.matmul %136, %138, %cst_58 {dimension_numbers = #tpu.dot_dimension_numbers<[1], [1], [0], [0], [0, 0, 1, 0], [], []>} : vector<8x8xbf16>, vector<12x8xbf16>, vector<8x12xf32> -> vector<8x12xf32>
    %cst_59 = arith.constant -1.000000e+09 : f32
    %142 = vector.broadcast %cst_59 : f32 to vector<8x12xf32>
    %143 = arith.select %7, %141, %142 : vector<8x12xi1>, vector<8x12xf32>
    %cst_60 = arith.constant dense<0xFF800000> : vector<8xf32>
    %144 = vector.multi_reduction <maximumf>, %143, %cst_60 [1] : vector<8x12xf32> to vector<8xf32>
    %145 = vector.shape_cast %144 : vector<8xf32> to vector<8x1xf32>
    %146 = vector.broadcast %145 : vector<8x1xf32> to vector<8x12xf32>
    %147 = arith.subf %143, %146 : vector<8x12xf32>
    %148 = math.exp %147 : vector<8x12xf32>
    %cst_61 = arith.constant dense<0.000000e+00> : vector<8xf32>
    %149 = vector.multi_reduction <add>, %148, %cst_61 [1] : vector<8x12xf32> to vector<8xf32>
    %150 = vector.shape_cast %149 : vector<8xf32> to vector<8x1xf32>
    %151 = tpu.reciprocal %150 {approx = true} : vector<8x1xf32> -> vector<8x1xf32>
    %152 = vector.broadcast %151 : vector<8x1xf32> to vector<8x12xf32>
    %153 = arith.mulf %148, %152 : vector<8x12xf32>
    %154 = arith.truncf %153 : vector<8x12xf32> to vector<8x12xbf16>
    %cst_62 = arith.constant dense<0.000000e+00> : vector<8x8xf32>
    %155 = tpu.matmul %154, %140, %cst_62 {dimension_numbers = #tpu.dot_dimension_numbers<[1], [0], [0], [1], [0, 0, 1, 1], [], []>} : vector<8x12xbf16>, vector<12x8xbf16>, vector<8x8xf32> -> vector<8x8xf32>
    %c24 = arith.constant 24 : index
    %c0_63 = arith.constant 0 : index
    %156 = vector.load %arg12[%c24, %c0_63] : memref<32x32xf32, #tpu.memory_space<vmem>>, vector<8x32xf32>
    %157 = arith.truncf %156 : vector<8x32xf32> to vector<8x32xbf16>
    %158 = arith.truncf %155 : vector<8x8xf32> to vector<8x8xbf16>
    %cst_64 = arith.constant dense<0.000000e+00> : vector<8x32xf32>
    %159 = tpu.matmul %158, %157, %cst_64 {dimension_numbers = #tpu.dot_dimension_numbers<[1], [0], [0], [1], [0, 0, 1, 1], [], []>} : vector<8x8xbf16>, vector<8x32xbf16>, vector<8x32xf32> -> vector<8x32xf32>
    %160 = arith.addf %134, %159 : vector<8x32xf32>
    %c0_65 = arith.constant 0 : index
    %c0_66 = arith.constant 0 : index
    %c0_67 = arith.constant 0 : index
    %161 = vector.load %arg14[%c0_65, %c0_66, %c0_67] : memref<1x8x32xf32, #tpu.memory_space<vmem>>, vector<1x8x32xf32>
    %162 = vector.shape_cast %161 : vector<1x8x32xf32> to vector<8x32xf32>
    %163 = vector.shape_cast %160 : vector<8x32xf32> to vector<1x8x32xf32>
    tpu.vector_store %arg14[%c0_65, %c0_66, %c0_67], %163 {strides = array<i32>} : memref<1x8x32xf32, #tpu.memory_space<vmem>>, vector<1x8x32xf32>,
    return
  }
  func.func @transform_0(%arg0: i32) -> (i32, i32, i32) {
    %c0_i32 = arith.constant 0 : i32
    %c0_i32_0 = arith.constant 0 : i32
    %c0_i32_1 = arith.constant 0 : i32
    return %arg0, %c0_i32, %c0_i32_0 : i32, i32, i32
  }
  func.func @transform_1(%arg0: i32) -> (i32, i32, i32) {
    %c0_i32 = arith.constant 0 : i32
    %c0_i32_0 = arith.constant 0 : i32
    %c0_i32_1 = arith.constant 0 : i32
    return %arg0, %c0_i32, %c0_i32_0 : i32, i32, i32
  }
  func.func @transform_2(%arg0: i32) -> (i32, i32, i32, i32) {
    %c0_i32 = arith.constant 0 : i32
    %c0_i32_0 = arith.constant 0 : i32
    %c0_i32_1 = arith.constant 0 : i32
    %c0_i32_2 = arith.constant 0 : i32
    return %arg0, %c0_i32, %c0_i32_0, %c0_i32_1 : i32, i32, i32, i32
  }
  func.func @transform_3(%arg0: i32) -> (i32, i32) {
    %c0_i32 = arith.constant 0 : i32
    %c0_i32_0 = arith.constant 0 : i32
    %c0_i32_1 = arith.constant 0 : i32
    return %c0_i32, %c0_i32_0 : i32, i32
  }
  func.func @transform_4(%arg0: i32) -> (i32, i32) {
    %c0_i32 = arith.constant 0 : i32
    %c0_i32_0 = arith.constant 0 : i32
    %c0_i32_1 = arith.constant 0 : i32
    return %c0_i32, %c0_i32_0 : i32, i32
  }
  func.func @transform_5(%arg0: i32) -> (i32, i32) {
    %c0_i32 = arith.constant 0 : i32
    %c0_i32_0 = arith.constant 0 : i32
    %c0_i32_1 = arith.constant 0 : i32
    return %c0_i32, %c0_i32_0 : i32, i32
  }
  func.func @transform_6(%arg0: i32) -> (i32, i32) {
    %c0_i32 = arith.constant 0 : i32
    %c0_i32_0 = arith.constant 0 : i32
    %c0_i32_1 = arith.constant 0 : i32
    return %c0_i32, %c0_i32_0 : i32, i32
  }
  func.func @transform_7(%arg0: i32) -> (i32, i32) {
    %c0_i32 = arith.constant 0 : i32
    %c0_i32_0 = arith.constant 0 : i32
    %c0_i32_1 = arith.constant 0 : i32
    return %c0_i32, %c0_i32_0 : i32, i32
  }
  func.func @transform_8(%arg0: i32) -> (i32, i32) {
    %c0_i32 = arith.constant 0 : i32
    %c0_i32_0 = arith.constant 0 : i32
    %c0_i32_1 = arith.constant 0 : i32
    return %c0_i32, %c0_i32_0 : i32, i32
  }
  func.func @transform_9(%arg0: i32) -> (i32, i32) {
    %c0_i32 = arith.constant 0 : i32
    %c0_i32_0 = arith.constant 0 : i32
    %c0_i32_1 = arith.constant 0 : i32
    return %c0_i32, %c0_i32_0 : i32, i32
  }
  func.func @transform_10(%arg0: i32) -> (i32, i32) {
    %c0_i32 = arith.constant 0 : i32
    %c0_i32_0 = arith.constant 0 : i32
    %c0_i32_1 = arith.constant 0 : i32
    return %c0_i32, %c0_i32_0 : i32, i32
  }
  func.func @transform_11(%arg0: i32) -> (i32, i32) {
    %c0_i32 = arith.constant 0 : i32
    %c0_i32_0 = arith.constant 0 : i32
    %c0_i32_1 = arith.constant 0 : i32
    return %c0_i32, %c0_i32_0 : i32, i32
  }
  func.func @transform_12(%arg0: i32) -> (i32, i32) {
    %c0_i32 = arith.constant 0 : i32
    %c0_i32_0 = arith.constant 0 : i32
    %c0_i32_1 = arith.constant 0 : i32
    return %c0_i32, %c0_i32_0 : i32, i32
  }
  func.func @transform_13(%arg0: i32) -> (i32, i32, i32) {
    %c0_i32 = arith.constant 0 : i32
    %c0_i32_0 = arith.constant 0 : i32
    %c0_i32_1 = arith.constant 0 : i32
    return %arg0, %c0_i32, %c0_i32_0 : i32, i32, i32
  }
}

</mosaic_0001>

<llo_original>
// kernel: tpu_custom_call.1
$region0: #{tpu_custom_call.1}
  #allocation0 [shape = 'u32[]', space=smem, size = 0x4, offset = 0x4, fixed_abs, tag = 'smem constant byte address 0x4 - core index']
  #allocation1 [shape = 'u32[144,128]{1,0:T(1,128)}', space=vmem, size = 0x12000, scoped, tag = 'internal scratch']
  %s0 = inlined_call_operand.hbm [shape: f32[2,8,32], index: 0, kind: input, shape index: {}]
  %s1 = inlined_call_operand.vmem [shape: f32[2,12,32], index: 1, kind: input, shape index: {}]
  %s2 = inlined_call_operand.hbm [shape: f32[2,1,8,12], index: 2, kind: input, shape index: {}]
  %s3 = inlined_call_operand.vmem [shape: f32[1,32], index: 3, kind: input, shape index: {}]
  %s4 = inlined_call_operand.hbm [shape: f32[1,32], index: 4, kind: input, shape index: {}]
  %s5 = inlined_call_operand.vmem [shape: f32[32,32], index: 5, kind: input, shape index: {}]
  %s6 = inlined_call_operand.vmem [shape: f32[1,32], index: 6, kind: input, shape index: {}]
  %s7 = inlined_call_operand.vmem [shape: f32[32,32], index: 7, kind: input, shape index: {}]
  %s8 = inlined_call_operand.vmem [shape: f32[1,32], index: 8, kind: input, shape index: {}]
  %s9 = inlined_call_operand.hbm [shape: f32[32,32], index: 9, kind: input, shape index: {}]
  %s10 = inlined_call_operand.vmem [shape: f32[1,32], index: 10, kind: input, shape index: {}]
  %s11 = inlined_call_operand.hbm [shape: f32[32,32], index: 11, kind: input, shape index: {}]
  %s12 = inlined_call_operand.vmem [shape: f32[1,32], index: 12, kind: input, shape index: {}]
  %s13 = inlined_call_operand.hbm [shape: f32[2,8,32], index: 13, kind: output, shape index: {}]
  %s14 = sld [smem:[#allocation0]]
  $region105: #{tpu_custom_call.1} parent=0
    _
  %s16 = ssub.s32 1, %s14
  %s17 = scalar_select 0, %s16, %s14
  $region1: #{tpu_custom_call.1} parent=0
    #allocation2 [shape = 'u8[8192]{0}', space=vmem, size = 0x2000, scoped, tag = 'input window, operand 0']
    #allocation3 [shape = 's32[2]{0}', space=sflag, size = 0x8, scoped, tag = 'scoped memory for tpu_custom_call.1']
    #allocation4 [shape = 's32[2]{0}', space=sflag, size = 0x8, scoped, tag = 'scoped memory for tpu_custom_call.1']
    #allocation5 [shape = 'u8[8192]{0}', space=vmem, size = 0x2000, scoped, tag = 'input window, operand 2']
    #allocation6 [shape = 's32[2]{0}', space=sflag, size = 0x8, scoped, tag = 'scoped memory for tpu_custom_call.1']
    #allocation7 [shape = 'u8[512]{0}', space=vmem, size = 0x400, scoped, tag = 'input window, operand 4, single buffered']
    #allocation8 [shape = 'u8[16384]{0}', space=vmem, size = 0x4000, scoped, tag = 'input window, operand 9, single buffered']
    #allocation9 [shape = 's32[1]{0}', space=sflag, size = 0x4, scoped, tag = 'scoped memory for tpu_custom_call.1']
    #allocation10 [shape = 'u8[16384]{0}', space=vmem, size = 0x4000, scoped, tag = 'input window, operand 11, single buffered']
    #allocation11 [shape = 'u8[8192]{0}', space=vmem, size = 0x2000, scoped, tag = 'output window, operand 0']
    %18 = vsyncpa [#allocation3], 0
    %s19 = scalar_lea.sflag [#allocation3], 1
    %20 = vsyncpa %s19, 0
    %21 = vsyncpa [#allocation6], 0
    %s22 = scalar_lea.sflag [#allocation6], 1
    %23 = vsyncpa %s22, 0
    %24 = vsyncpa [#allocation9], 0
    %25 = vsyncpa [#allocation4], 0
    %s26 = scalar_lea.sflag [#allocation4], 1
    %27 = vsyncpa %s26, 0
    loop: start=0, step=1, limit=4
    $region2: #{tpu_custom_call.1} parent=1 // loop_pre_header
      _
    $region3: #{tpu_custom_call.1} parent=1 // loop_header
      %s29 = sphi 0, %s33
      %p30 = scmp.ge.s32.totalorder %s29, 4
      %s39 = sphi 0, %s41
      %s42 = sphi 0, %s39
      %s43 = sphi 0, %s42
      %s59 = sphi 0, %s43
      %s65 = sphi 0, %s67
      %s68 = sphi 0, %s65
      %s69 = sphi 0, %s68
      %s85 = sphi 0, %s69
      %s91 = sphi 0, %s93
      %s94 = sphi 0, %s91
      %s95 = sphi 0, %s94
      %s111 = sphi 0, %s95
      %s115 = sphi 0, %s115
      %s117 = sphi 0, %s115
      %s118 = sphi 0, %s117
      %s132 = sphi 0, %s118
      %s136 = sphi 0, %s136
      %s138 = sphi 0, %s136
      %s139 = sphi 0, %s138
      %s153 = sphi 0, %s139
      %s157 = sphi 0, %s157
      %s159 = sphi 0, %s157
      %s160 = sphi 0, %s159
      %s174 = sphi 0, %s160
      %s178 = sphi 0, %s178
      %s180 = sphi 0, %s178
      %s181 = sphi 0, %s180
      %s195 = sphi 0, %s181
      %s199 = sphi 0, %s199
      %s201 = sphi 0, %s199
      %s202 = sphi 0, %s201
      %s216 = sphi 0, %s202
      %s220 = sphi 0, %s220
      %s222 = sphi 0, %s220
      %s223 = sphi 0, %s222
      %s237 = sphi 0, %s223
      %s241 = sphi 0, %s241
      %s243 = sphi 0, %s241
      %s244 = sphi 0, %s243
      %s258 = sphi 0, %s244
      %s262 = sphi 0, %s262
      %s264 = sphi 0, %s262
      %s265 = sphi 0, %s264
      %s279 = sphi 0, %s265
      %s283 = sphi 0, %s283
      %s285 = sphi 0, %s283
      %s286 = sphi 0, %s285
      %s300 = sphi 0, %s286
      %s304 = sphi 0, %s304
      %s306 = sphi 0, %s304
      %s307 = sphi 0, %s306
      %s321 = sphi 0, %s307
      %s327 = sphi 0, %s329
      %s330 = sphi 0, %s327
      %s331 = sphi 0, %s330
      %s347 = sphi 0, %s331
    $region4: #{tpu_custom_call.1} parent=1 // loop_header_branch
      %32 = sbr.rel (%p30) target = $region8
    $region5: #{tpu_custom_call.1} parent=1 // loop_body
      %s34 = ssub.s32 %s29, 1
      %s35 = ssub.s32 %s29, 2
      %s36 = sadd.s32 %s29, 1
      %s37 = ssub.s32 %s29, %s36
      %p38 = scmp.eq.s32.totalorder %s37, 0
      %s40 = sadd.s32 %s39, 1
      %s41 = scalar_select %p38, %s39, %s40
      %p44 = pneg %p38
      %p45 = scmp.eq.s32.totalorder %s29, 1
      %p46 = por %p44, %p45
      %p47 = scmp.ne.s32.totalorder %s39, %s42
      %p48 = scmp.eq.s32.totalorder %s29, 0
      %p49 = por %p47, %p48
      %p50 = scmp.ne.s32.totalorder %s39, %s42
      %p51 = scmp.eq.s32.totalorder %s34, 1
      %p52 = por %p50, %p51
      %p53 = scmp.ne.s32.totalorder %s42, %s43
      %p54 = scmp.eq.s32.totalorder %s34, 0
      %p55 = por %p53, %p54
      %p56 = scmp.ne.s32.totalorder %s42, %s43
      %p57 = scmp.eq.s32.totalorder %s35, 1
      %p58 = por %p56, %p57
      %p60 = scmp.ne.s32.totalorder %s43, %s59
      %p61 = scmp.eq.s32.totalorder %s35, 0
      %p62 = por %p60, %p61
      %s63 = ssub.s32 %s29, %s36
      %p64 = scmp.eq.s32.totalorder %s63, 0
      %s66 = sadd.s32 %s65, 1
      %s67 = scalar_select %p64, %s65, %s66
      %p70 = pneg %p64
      %p71 = scmp.eq.s32.totalorder %s29, 1
      %p72 = por %p70, %p71
      %p73 = scmp.ne.s32.totalorder %s65, %s68
      %p74 = scmp.eq.s32.totalorder %s29, 0
      %p75 = por %p73, %p74
      %p76 = scmp.ne.s32.totalorder %s65, %s68
      %p77 = scmp.eq.s32.totalorder %s34, 1
      %p78 = por %p76, %p77
      %p79 = scmp.ne.s32.totalorder %s68, %s69
      %p80 = scmp.eq.s32.totalorder %s34, 0
      %p81 = por %p79, %p80
      %p82 = scmp.ne.s32.totalorder %s68, %s69
      %p83 = scmp.eq.s32.totalorder %s35, 1
      %p84 = por %p82, %p83
      %p86 = scmp.ne.s32.totalorder %s69, %s85
      %p87 = scmp.eq.s32.totalorder %s35, 0
      %p88 = por %p86, %p87
      %s89 = ssub.s32 %s29, %s36
      %p90 = scmp.eq.s32.totalorder %s89, 0
      %s92 = sadd.s32 %s91, 1
      %s93 = scalar_select %p90, %s91, %s92
      %p96 = pneg %p90
      %p97 = scmp.eq.s32.totalorder %s29, 1
      %p98 = por %p96, %p97
      %p99 = scmp.ne.s32.totalorder %s91, %s94
      %p100 = scmp.eq.s32.totalorder %s29, 0
      %p101 = por %p99, %p100
      %p102 = scmp.ne.s32.totalorder %s91, %s94
      %p103 = scmp.eq.s32.totalorder %s34, 1
      %p104 = por %p102, %p103
      %p105 = scmp.ne.s32.totalorder %s94, %s95
      %p106 = scmp.eq.s32.totalorder %s34, 0
      %p107 = por %p105, %p106
      %p108 = scmp.ne.s32.totalorder %s94, %s95
      %p109 = scmp.eq.s32.totalorder %s35, 1
      %p110 = por %p108, %p109
      %p112 = scmp.ne.s32.totalorder %s95, %s111
      %p113 = scmp.eq.s32.totalorder %s35, 0
      %p114 = por %p112, %p113
      %s116 = sadd.s32 %s115, 1
      %p119 = scmp.eq.s32.totalorder %s29, 1
      %p120 = scmp.ne.s32.totalorder %s115, %s117
      %p121 = scmp.eq.s32.totalorder %s29, 0
      %p122 = por %p120, %p121
      %p123 = scmp.ne.s32.totalorder %s115, %s117
      %p124 = scmp.eq.s32.totalorder %s34, 1
      %p125 = por %p123, %p124
      %p126 = scmp.ne.s32.totalorder %s117, %s118
      %p127 = scmp.eq.s32.totalorder %s34, 0
      %p128 = por %p126, %p127
      %p129 = scmp.ne.s32.totalorder %s117, %s118
      %p130 = scmp.eq.s32.totalorder %s35, 1
      %p131 = por %p129, %p130
      %p133 = scmp.ne.s32.totalorder %s118, %s132
      %p134 = scmp.eq.s32.totalorder %s35, 0
      %p135 = por %p133, %p134
      %s137 = sadd.s32 %s136, 1
      %p140 = scmp.eq.s32.totalorder %s29, 1
      %p141 = scmp.ne.s32.totalorder %s136, %s138
      %p142 = scmp.eq.s32.totalorder %s29, 0
      %p143 = por %p141, %p142
      %p144 = scmp.ne.s32.totalorder %s136, %s138
      %p145 = scmp.eq.s32.totalorder %s34, 1
      %p146 = por %p144, %p145
      %p147 = scmp.ne.s32.totalorder %s138, %s139
      %p148 = scmp.eq.s32.totalorder %s34, 0
      %p149 = por %p147, %p148
      %p150 = scmp.ne.s32.totalorder %s138, %s139
      %p151 = scmp.eq.s32.totalorder %s35, 1
      %p152 = por %p150, %p151
      %p154 = scmp.ne.s32.totalorder %s139, %s153
      %p155 = scmp.eq.s32.totalorder %s35, 0
      %p156 = por %p154, %p155
      %s158 = sadd.s32 %s157, 1
      %p161 = scmp.eq.s32.totalorder %s29, 1
      %p162 = scmp.ne.s32.totalorder %s157, %s159
      %p163 = scmp.eq.s32.totalorder %s29, 0
      %p164 = por %p162, %p163
      %p165 = scmp.ne.s32.totalorder %s157, %s159
      %p166 = scmp.eq.s32.totalorder %s34, 1
      %p167 = por %p165, %p166
      %p168 = scmp.ne.s32.totalorder %s159, %s160
      %p169 = scmp.eq.s32.totalorder %s34, 0
      %p170 = por %p168, %p169
      %p171 = scmp.ne.s32.totalorder %s159, %s160
      %p172 = scmp.eq.s32.totalorder %s35, 1
      %p173 = por %p171, %p172
      %p175 = scmp.ne.s32.totalorder %s160, %s174
      %p176 = scmp.eq.s32.totalorder %s35, 0
      %p177 = por %p175, %p176
      %s179 = sadd.s32 %s178, 1
      %p182 = scmp.eq.s32.totalorder %s29, 1
      %p183 = scmp.ne.s32.totalorder %s178, %s180
      %p184 = scmp.eq.s32.totalorder %s29, 0
      %p185 = por %p183, %p184
      %p186 = scmp.ne.s32.totalorder %s178, %s180
      %p187 = scmp.eq.s32.totalorder %s34, 1
      %p188 = por %p186, %p187
      %p189 = scmp.ne.s32.totalorder %s180, %s181
      %p190 = scmp.eq.s32.totalorder %s34, 0
      %p191 = por %p189, %p190
      %p192 = scmp.ne.s32.totalorder %s180, %s181
      %p193 = scmp.eq.s32.totalorder %s35, 1
      %p194 = por %p192, %p193
      %p196 = scmp.ne.s32.totalorder %s181, %s195
      %p197 = scmp.eq.s32.totalorder %s35, 0
      %p198 = por %p196, %p197
      %s200 = sadd.s32 %s199, 1
      %p203 = scmp.eq.s32.totalorder %s29, 1
      %p204 = scmp.ne.s32.totalorder %s199, %s201
      %p205 = scmp.eq.s32.totalorder %s29, 0
      %p206 = por %p204, %p205
      %p207 = scmp.ne.s32.totalorder %s199, %s201
      %p208 = scmp.eq.s32.totalorder %s34, 1
      %p209 = por %p207, %p208
      %p210 = scmp.ne.s32.totalorder %s201, %s202
      %p211 = scmp.eq.s32.totalorder %s34, 0
      %p212 = por %p210, %p211
      %p213 = scmp.ne.s32.totalorder %s201, %s202
      %p214 = scmp.eq.s32.totalorder %s35, 1
      %p215 = por %p213, %p214
      %p217 = scmp.ne.s32.totalorder %s202, %s216
      %p218 = scmp.eq.s32.totalorder %s35, 0
      %p219 = por %p217, %p218
      %s221 = sadd.s32 %s220, 1
      %p224 = scmp.eq.s32.totalorder %s29, 1
      %p225 = scmp.ne.s32.totalorder %s220, %s222
      %p226 = scmp.eq.s32.totalorder %s29, 0
      %p227 = por %p225, %p226
      %p228 = scmp.ne.s32.totalorder %s220, %s222
      %p229 = scmp.eq.s32.totalorder %s34, 1
      %p230 = por %p228, %p229
      %p231 = scmp.ne.s32.totalorder %s222, %s223
      %p232 = scmp.eq.s32.totalorder %s34, 0
      %p233 = por %p231, %p232
      %p234 = scmp.ne.s32.totalorder %s222, %s223
      %p235 = scmp.eq.s32.totalorder %s35, 1
      %p236 = por %p234, %p235
      %p238 = scmp.ne.s32.totalorder %s223, %s237
      %p239 = scmp.eq.s32.totalorder %s35, 0
      %p240 = por %p238, %p239
      %s242 = sadd.s32 %s241, 1
      %p245 = scmp.eq.s32.totalorder %s29, 1
      %p246 = scmp.ne.s32.totalorder %s241, %s243
      %p247 = scmp.eq.s32.totalorder %s29, 0
      %p248 = por %p246, %p247
      %p249 = scmp.ne.s32.totalorder %s241, %s243
      %p250 = scmp.eq.s32.totalorder %s34, 1
      %p251 = por %p249, %p250
      %p252 = scmp.ne.s32.totalorder %s243, %s244
      %p253 = scmp.eq.s32.totalorder %s34, 0
      %p254 = por %p252, %p253
      %p255 = scmp.ne.s32.totalorder %s243, %s244
      %p256 = scmp.eq.s32.totalorder %s35, 1
      %p257 = por %p255, %p256
      %p259 = scmp.ne.s32.totalorder %s244, %s258
      %p260 = scmp.eq.s32.totalorder %s35, 0
      %p261 = por %p259, %p260
      %s263 = sadd.s32 %s262, 1
      %p266 = scmp.eq.s32.totalorder %s29, 1
      %p267 = scmp.ne.s32.totalorder %s262, %s264
      %p268 = scmp.eq.s32.totalorder %s29, 0
      %p269 = por %p267, %p268
      %p270 = scmp.ne.s32.totalorder %s262, %s264
      %p271 = scmp.eq.s32.totalorder %s34, 1
      %p272 = por %p270, %p271
      %p273 = scmp.ne.s32.totalorder %s264, %s265
      %p274 = scmp.eq.s32.totalorder %s34, 0
      %p275 = por %p273, %p274
      %p276 = scmp.ne.s32.totalorder %s264, %s265
      %p277 = scmp.eq.s32.totalorder %s35, 1
      %p278 = por %p276, %p277
      %p280 = scmp.ne.s32.totalorder %s265, %s279
      %p281 = scmp.eq.s32.totalorder %s35, 0
      %p282 = por %p280, %p281
      %s284 = sadd.s32 %s283, 1
      %p287 = scmp.eq.s32.totalorder %s29, 1
      %p288 = scmp.ne.s32.totalorder %s283, %s285
      %p289 = scmp.eq.s32.totalorder %s29, 0
      %p290 = por %p288, %p289
      %p291 = scmp.ne.s32.totalorder %s283, %s285
      %p292 = scmp.eq.s32.totalorder %s34, 1
      %p293 = por %p291, %p292
      %p294 = scmp.ne.s32.totalorder %s285, %s286
      %p295 = scmp.eq.s32.totalorder %s34, 0
      %p296 = por %p294, %p295
      %p297 = scmp.ne.s32.totalorder %s285, %s286
      %p298 = scmp.eq.s32.totalorder %s35, 1
      %p299 = por %p297, %p298
      %p301 = scmp.ne.s32.totalorder %s286, %s300
      %p302 = scmp.eq.s32.totalorder %s35, 0
      %p303 = por %p301, %p302
      %s305 = sadd.s32 %s304, 1
      %p308 = scmp.eq.s32.totalorder %s29, 1
      %p309 = scmp.ne.s32.totalorder %s304, %s306
      %p310 = scmp.eq.s32.totalorder %s29, 0
      %p311 = por %p309, %p310
      %p312 = scmp.ne.s32.totalorder %s304, %s306
      %p313 = scmp.eq.s32.totalorder %s34, 1
      %p314 = por %p312, %p313
      %p315 = scmp.ne.s32.totalorder %s306, %s307
      %p316 = scmp.eq.s32.totalorder %s34, 0
      %p317 = por %p315, %p316
      %p318 = scmp.ne.s32.totalorder %s306, %s307
      %p319 = scmp.eq.s32.totalorder %s35, 1
      %p320 = por %p318, %p319
      %p322 = scmp.ne.s32.totalorder %s307, %s321
      %p323 = scmp.eq.s32.totalorder %s35, 0
      %p324 = por %p322, %p323
      %s325 = ssub.s32 %s29, %s36
      %p326 = scmp.eq.s32.totalorder %s325, 0
      %s328 = sadd.s32 %s327, 1
      %s329 = scalar_select %p326, %s327, %s328
      %p332 = pneg %p326
      %p333 = scmp.eq.s32.totalorder %s29, 1
      %p334 = por %p332, %p333
      %p335 = scmp.ne.s32.totalorder %s327, %s330
      %p336 = scmp.eq.s32.totalorder %s29, 0
      %p337 = por %p335, %p336
      %p338 = scmp.ne.s32.totalorder %s327, %s330
      %p339 = scmp.eq.s32.totalorder %s34, 1
      %p340 = por %p338, %p339
      %p341 = scmp.ne.s32.totalorder %s330, %s331
      %p342 = scmp.eq.s32.totalorder %s34, 0
      %p343 = por %p341, %p342
      %p344 = scmp.ne.s32.totalorder %s330, %s331
      %p345 = scmp.eq.s32.totalorder %s35, 1
      %p346 = por %p344, %p345
      %p348 = scmp.ne.s32.totalorder %s331, %s347
      %p349 = scmp.eq.s32.totalorder %s35, 0
      %p350 = por %p348, %p349
      %p351 = scmp.le.s32.totalorder 1, %s29
      %p352 = scmp.lt.s32.totalorder %s29, 3
      %p353 = pnand %p351, %p352
      %p354 = pneg %p353
      // Predicated region
      $region9: #{tpu_custom_call.1} parent=5 // pred_check
        _
      $region10: #{tpu_custom_call.1} parent=5 // pred_check_branch
        %356 = sbr.rel (%p353) target = $region12
      $region11: #{tpu_custom_call.1} parent=5 // pred_region
        %s357 = ssub.s32 %s29, 1
        // Predicated region
        $region13: #{tpu_custom_call.1} parent=11 // pred_check
          %p358 = pneg %p128
        $region14: #{tpu_custom_call.1} parent=11 // pred_check_branch
          %360 = sbr.rel (%p358) target = $region16
        $region15: #{tpu_custom_call.1} parent=11 // pred_region
          _
        $region16: #{tpu_custom_call.1} parent=11 // pred_fallthru
          _
        // Predicated region
        $region17: #{tpu_custom_call.1} parent=11 // pred_check
          %p361 = pneg %p149
        $region18: #{tpu_custom_call.1} parent=11 // pred_check_branch
          %363 = sbr.rel (%p361) target = $region20
        $region19: #{tpu_custom_call.1} parent=11 // pred_region
          %s365 = ssub.s32 16, 16
          %366 = vsyncadd [#allocation6], %s365
          %s368 = sshll.u32 [#allocation7], 4
          %s369 = int_to_ptr.vmem [resolvable:$true] %s368
          %371 = dma.hbm_to_vmem [thread:$0]  %s4, 16, %s369, [#allocation6]
        $region20: #{tpu_custom_call.1} parent=11 // pred_fallthru
          _
        // Predicated region
        $region21: #{tpu_custom_call.1} parent=11 // pred_check
          %p372 = pneg %p170
        $region22: #{tpu_custom_call.1} parent=11 // pred_check_branch
          %374 = sbr.rel (%p372) target = $region24
        $region23: #{tpu_custom_call.1} parent=11 // pred_region
          _
        $region24: #{tpu_custom_call.1} parent=11 // pred_fallthru
          _
        // Predicated region
        $region25: #{tpu_custom_call.1} parent=11 // pred_check
          %p375 = pneg %p191
        $region26: #{tpu_custom_call.1} parent=11 // pred_check_branch
          %377 = sbr.rel (%p375) target = $region28
        $region27: #{tpu_custom_call.1} parent=11 // pred_region
          _
        $region28: #{tpu_custom_call.1} parent=11 // pred_fallthru
          _
        // Predicated region
        $region29: #{tpu_custom_call.1} parent=11 // pred_check
          %p378 = pneg %p212
        $region30: #{tpu_custom_call.1} parent=11 // pred_check_branch
          %380 = sbr.rel (%p378) target = $region32
        $region31: #{tpu_custom_call.1} parent=11 // pred_region
          _
        $region32: #{tpu_custom_call.1} parent=11 // pred_fallthru
          _
        // Predicated region
        $region33: #{tpu_custom_call.1} parent=11 // pred_check
          %p381 = pneg %p233
        $region34: #{tpu_custom_call.1} parent=11 // pred_check_branch
          %383 = sbr.rel (%p381) target = $region36
        $region35: #{tpu_custom_call.1} parent=11 // pred_region
          _
        $region36: #{tpu_custom_call.1} parent=11 // pred_fallthru
          _
        // Predicated region
        $region37: #{tpu_custom_call.1} parent=11 // pred_check
          %p384 = pneg %p254
        $region38: #{tpu_custom_call.1} parent=11 // pred_check_branch
          %386 = sbr.rel (%p384) target = $region40
        $region39: #{tpu_custom_call.1} parent=11 // pred_region
          %s388 = ssub.s32 512, 512
          %389 = vsyncadd [#allocation9], %s388
          %s390 = sshll.u32 [#allocation8], 4
          %s391 = int_to_ptr.vmem [resolvable:$true] %s390
          %396 = dma.hbm_to_vmem [thread:$0]  %s9, 512, %s391, [#allocation9], 128, 128, 8
        $region40: #{tpu_custom_call.1} parent=11 // pred_fallthru
          _
        // Predicated region
        $region41: #{tpu_custom_call.1} parent=11 // pred_check
          %p397 = pneg %p275
        $region42: #{tpu_custom_call.1} parent=11 // pred_check_branch
          %399 = sbr.rel (%p397) target = $region44
        $region43: #{tpu_custom_call.1} parent=11 // pred_region
          _
        $region44: #{tpu_custom_call.1} parent=11 // pred_fallthru
          _
        // Predicated region
        $region45: #{tpu_custom_call.1} parent=11 // pred_check
          %p400 = pneg %p296
        $region46: #{tpu_custom_call.1} parent=11 // pred_check_branch
          %402 = sbr.rel (%p400) target = $region48
        $region47: #{tpu_custom_call.1} parent=11 // pred_region
          %s404 = ssub.s32 512, 512
          %405 = vsyncadd [#allocation9], %s404
          %s406 = sshll.u32 [#allocation10], 4
          %s407 = int_to_ptr.vmem [resolvable:$true] %s406
          %412 = dma.hbm_to_vmem [thread:$0]  %s11, 512, %s407, [#allocation9], 128, 128, 8
        $region48: #{tpu_custom_call.1} parent=11 // pred_fallthru
          _
        // Predicated region
        $region49: #{tpu_custom_call.1} parent=11 // pred_check
          %p413 = pneg %p317
        $region50: #{tpu_custom_call.1} parent=11 // pred_check_branch
          %415 = sbr.rel (%p413) target = $region52
        $region51: #{tpu_custom_call.1} parent=11 // pred_region
          _
        $region52: #{tpu_custom_call.1} parent=11 // pred_fallthru
          _
      $region12: #{tpu_custom_call.1} parent=5 // pred_fallthru
        _
      %p416 = scmp.lt.s32.totalorder %s29, 2
      // Predicated region
      $region53: #{tpu_custom_call.1} parent=5 // pred_check
        %p417 = pneg %p416
      $region54: #{tpu_custom_call.1} parent=5 // pred_check_branch
        %419 = sbr.rel (%p417) target = $region56
      $region55: #{tpu_custom_call.1} parent=5 // pred_region
        // Predicated region
        $region57: #{tpu_custom_call.1} parent=55 // pred_check
          %p420 = pneg %p49
        $region58: #{tpu_custom_call.1} parent=55 // pred_check_branch
          %422 = sbr.rel (%p420) target = $region60
        $region59: #{tpu_custom_call.1} parent=55 // pred_region
          %s423 = sand.u32 %s39, 1
          %s424 = scalar_lea.sflag [#allocation3], %s423
          %s425 = sand.u32 %s39, 1
          %s426 = smul.addr %s425, 8
          %s427 = scalar_lea.vmem [#allocation2], %s426
          %s429 = ssub.s32 128, 128
          %430 = vsyncadd %s424, %s429
          %s431 = smul.addr %s29, 128
          %s432 = scalar_lea.hbm %s0, %s431
          %s434 = sshll.u32 %s427, 4
          %s435 = int_to_ptr.vmem [resolvable:$true] %s434
          %437 = dma.hbm_to_vmem [thread:$0]  %s432, 128, %s435, %s424
        $region60: #{tpu_custom_call.1} parent=55 // pred_fallthru
          _
        // Predicated region
        $region61: #{tpu_custom_call.1} parent=55 // pred_check
          %p438 = pneg %p75
        $region62: #{tpu_custom_call.1} parent=55 // pred_check_branch
          %440 = sbr.rel (%p438) target = $region64
        $region63: #{tpu_custom_call.1} parent=55 // pred_region
          %p441 = scmp.lt.s32.totalorder %s29, 1
          %s442 = scalar_select %p441, %s29, 1
          %s443 = smul.addr %s442, 2
          %s444 = smul.addr %s443, 8
          %s445 = scalar_lea.vmem %s1, %s444
        $region64: #{tpu_custom_call.1} parent=55 // pred_fallthru
          _
        // Predicated region
        $region65: #{tpu_custom_call.1} parent=55 // pred_check
          %p446 = pneg %p101
        $region66: #{tpu_custom_call.1} parent=55 // pred_check_branch
          %448 = sbr.rel (%p446) target = $region68
        $region67: #{tpu_custom_call.1} parent=55 // pred_region
          %s449 = sand.u32 %s29, 1
          %s450 = scalar_lea.sflag [#allocation6], %s449
          %s451 = sand.u32 %s91, 1
          %s452 = smul.addr %s451, 8
          %s453 = scalar_lea.vmem [#allocation5], %s452
          %s455 = ssub.s32 128, 128
          %456 = vsyncadd %s450, %s455
          %s457 = smul.addr %s29, 128
          %s458 = scalar_lea.hbm %s2, %s457
          %s460 = sshll.u32 %s453, 4
          %s461 = int_to_ptr.vmem [resolvable:$true] %s460
          %463 = dma.hbm_to_vmem [thread:$0]  %s458, 128, %s461, %s450
        $region68: #{tpu_custom_call.1} parent=55 // pred_fallthru
          _
      $region56: #{tpu_custom_call.1} parent=5 // pred_fallthru
        _
      %p464 = scmp.le.s32.totalorder 1, %s29
      %p465 = scmp.lt.s32.totalorder %s29, 3
      %p466 = pnand %p464, %p465
      %p467 = pneg %p466
      // Predicated region
      $region69: #{tpu_custom_call.1} parent=5 // pred_check
        _
      $region70: #{tpu_custom_call.1} parent=5 // pred_check_branch
        %469 = sbr.rel (%p466) target = $region72
      $region71: #{tpu_custom_call.1} parent=5 // pred_region
        %s470 = ssub.s32 %s29, 1
        %s471 = sand.u32 %s42, 1
        %s472 = scalar_lea.sflag [#allocation3], %s471
        %s473 = sand.u32 %s42, 1
        %s474 = smul.addr %s473, 8
        %s475 = scalar_lea.vmem [#allocation2], %s474
        // Predicated region
        $region73: #{tpu_custom_call.1} parent=71 // pred_check
          %p476 = pneg %p55
        $region74: #{tpu_custom_call.1} parent=71 // pred_check_branch
          %478 = sbr.rel (%p476) target = $region76
        $region75: #{tpu_custom_call.1} parent=71 // pred_region
          %479 = dma.done %s472, 128
        $region76: #{tpu_custom_call.1} parent=71 // pred_fallthru
          _
        %s480 = sand.u32 %s34, 1
        %s481 = scalar_lea.sflag [#allocation6], %s480
        %s482 = sand.u32 %s94, 1
        %s483 = smul.addr %s482, 8
        %s484 = scalar_lea.vmem [#allocation5], %s483
        // Predicated region
        $region77: #{tpu_custom_call.1} parent=71 // pred_check
          %p485 = pneg %p107
        $region78: #{tpu_custom_call.1} parent=71 // pred_check_branch
          %487 = sbr.rel (%p485) target = $region80
        $region79: #{tpu_custom_call.1} parent=71 // pred_region
          %488 = dma.done %s481, 128
        $region80: #{tpu_custom_call.1} parent=71 // pred_fallthru
          _
        // Predicated region
        $region81: #{tpu_custom_call.1} parent=71 // pred_check
          %p489 = pneg %p149
        $region82: #{tpu_custom_call.1} parent=71 // pred_check_branch
          %491 = sbr.rel (%p489) target = $region84
        $region83: #{tpu_custom_call.1} parent=71 // pred_region
          %492 = dma.done [#allocation6], 16
        $region84: #{tpu_custom_call.1} parent=71 // pred_fallthru
          _
        // Predicated region
        $region85: #{tpu_custom_call.1} parent=71 // pred_check
          %p493 = pneg %p254
        $region86: #{tpu_custom_call.1} parent=71 // pred_check_branch
          %495 = sbr.rel (%p493) target = $region88
        $region87: #{tpu_custom_call.1} parent=71 // pred_region
          %496 = dma.done [#allocation9], 512
        $region88: #{tpu_custom_call.1} parent=71 // pred_fallthru
          _
        // Predicated region
        $region89: #{tpu_custom_call.1} parent=71 // pred_check
          %p497 = pneg %p296
        $region90: #{tpu_custom_call.1} parent=71 // pred_check_branch
          %499 = sbr.rel (%p497) target = $region92
        $region91: #{tpu_custom_call.1} parent=71 // pred_region
          %500 = dma.done [#allocation9], 512
        $region92: #{tpu_custom_call.1} parent=71 // pred_fallthru
          _
        %s501 = sand.u32 %s42, 1
        %s502 = scalar_lea.sflag [#allocation3], %s501
        %s503 = sand.u32 %s42, 1
        %s504 = smul.addr %s503, 8
        %s505 = scalar_lea.vmem [#allocation2], %s504
        %p506 = pneg %p55
        %p507 = pneg %p52
        %p508 = scmp.lt.s32.totalorder %s34, 1
        %s509 = scalar_select %p508, %s34, 1
        %s510 = smul.addr %s509, 2
        %s511 = smul.addr %s510, 8
        %s512 = scalar_lea.vmem %s1, %s511
        %p513 = pneg %p81
        %p514 = pneg %p78
        %s515 = sand.u32 %s34, 1
        %s516 = scalar_lea.sflag [#allocation6], %s515
        %s517 = sand.u32 %s94, 1
        %s518 = smul.addr %s517, 8
        %s519 = scalar_lea.vmem [#allocation5], %s518
        %p520 = pneg %p107
        %p521 = pneg %p104
        %p522 = pneg %p128
        %p523 = pneg %p125
        %p524 = pneg %p149
        %p525 = pneg %p146
        %p526 = pneg %p170
        %p527 = pneg %p167
        %p528 = pneg %p191
        %p529 = pneg %p188
        %p530 = pneg %p212
        %p531 = pneg %p209
        %p532 = pneg %p233
        %p533 = pneg %p230
        %p534 = pneg %p254
        %p535 = pneg %p251
        %p536 = pneg %p275
        %p537 = pneg %p272
        %p538 = pneg %p296
        %p539 = pneg %p293
        %p540 = pneg %p317
        %p541 = pneg %p314
        %p542 = pneg %p343
        %p543 = pneg %p340
        %s544 = sand.u32 %s330, 1
        %s545 = scalar_lea.sflag [#allocation4], %s544
        %s546 = sand.u32 %s330, 1
        %s547 = smul.addr %s546, 8
        %s548 = scalar_lea.vmem [#allocation11], %s547
        %p549 = scmp.lt.s32.totalorder %s34, 1
        %s550 = scalar_select %p549, %s34, 1
        %s551 = smul.addr %s550, 2
        %s552 = smul.addr %s551, 8
        %s553 = scalar_lea.vmem %s1, %s552
        %v555 = vld [vmem:[%s475] sm:$0xff]
        %v556 = vld [vmem:[%s553] sm:$0xff]
        %v557 = vld [vmem:[%s553 + $0x8] sm:$0xf]
        %v558 = vld [vmem:[%s484] sm:$0xff]
        %vm559 = vcmp.ne.f32.partialorder %v558, 0.0
        %vm560 = vcmask 261120
        %v561 = vsel %vm560, %v555, 0.0
        %562 = vadd.xlane.f32.xlu0 %v561
        %v563 = vpop.xlane.xlu0 %562
        %v564 = vrcp.pop 32.0
        %v565 = vmul.f32 %v563, %v564
        %v566 = vsub.f32 %v555, %v565
        %v567 = vmul.f32 %v566, %v566
        %v568 = vsel %vm560, %v567, 0.0
        %569 = vadd.xlane.f32.xlu0 %v568
        %v570 = vpop.xlane.xlu0 %569
        %v571 = vmul.f32 %v570, %v564
        %v572 = vadd.f32 %v571, 1e-05
        %v573 = vrsqrt.pop %v572
        %v574 = vmul.f32 %v566, %v573
        %v575 = vld [vmem:[%s3] sm:$0x1]
        %v577 = vlaneseq
        %v578 = vshrl.u32 %v577, 7
        %v579 = vsub.s32 0, %v578
        %v580 = vrot.slane %v575, %v579
        %v582 = vmul.f32 %v574, %v580
        %v583 = vld [vmem:[#allocation7] sm:$0x1]
        %v585 = vlaneseq
        %v586 = vshrl.u32 %v585, 7
        %v587 = vsub.s32 0, %v586
        %v588 = vrot.slane %v583, %v587
        %v590 = vadd.f32 %v582, %v588
        %v591 = vpack.c.bf16 %v590, %v590
        %v592 = vpack.c.bf16 %v557, %v556
        %v593 = vld [vmem:[%s5] sm:$0xff]
        %v594 = vld [vmem:[%s5 + $0x8] sm:$0xff]
        %v595 = vld [vmem:[%s5 + $0x10] sm:$0xff]
        %v596 = vld [vmem:[%s5 + $0x18] sm:$0xff]
        %v597 = vpack.c.bf16 %v594, %v593
        %v598 = vpack.c.bf16 %v596, %v595
        %v599 = vld [vmem:[%s6] sm:$0x1]
        %v601 = vlaneseq
        %v602 = vshrl.u32 %v601, 7
        %v603 = vsub.s32 0, %v602
        %v604 = vrot.slane %v599, %v603
        %v607 = vsel %vm560, %v591, 0
        %609 = vmatprep.subr.bf16.mxu0 0
        %610 = vmatpush1.bf16.msra.mxu0 0
        %611 = vmatprep.subr.bf16.mxu0 0
        %612 = vmatpush1.bf16.msra.mxu0 0
        %613 = vmatprep.subr.bf16.mxu0 0
        %614 = vmatpush1.bf16.msra.mxu0 0
        %615 = vmatprep.subr.bf16.mxu0 0
        %616 = vmatpush1.bf16.msra.mxu0 0
        %617 = vmatprep.subr.bf16.mxu0 0
        %618 = vmatpush1.bf16.msra.mxu0 0
        %619 = vmatprep.subr.bf16.mxu0 0
        %620 = vmatpush1.bf16.msra.mxu0 0
        %621 = vmatprep.subr.bf16.mxu0 0
        %622 = vmatpush1.bf16.msra.mxu0 %v598
        %623 = vmatprep.subr.bf16.mxu0 0
        %624 = vmatpush1.bf16.msra.mxu0 %v597
        %625 = vmatprep.subr.bf16.mxu0 0
        %626 = vmatpush2.bf16.msra.mxu0 0
        %627 = vmatprep.subr.bf16.mxu0 0
        %628 = vmatpush2.bf16.msra.mxu0 0
        %629 = vmatprep.subr.bf16.mxu0 0
        %630 = vmatpush2.bf16.msra.mxu0 0
        %631 = vmatprep.subr.bf16.mxu0 0
        %632 = vmatpush2.bf16.msra.mxu0 0
        %633 = vmatprep.subr.bf16.mxu0 0
        %634 = vmatpush2.bf16.msra.mxu0 0
        %635 = vmatprep.subr.bf16.mxu0 0
        %636 = vmatpush2.bf16.msra.mxu0 0
        %637 = vmatprep.subr.bf16.mxu0 0
        %638 = vmatpush2.bf16.msra.mxu0 0
        %639 = vmatprep.subr.bf16.mxu0 0
        %640 = vmatpush2.bf16.msra.mxu0 0
        %641 = vmatprep.mubr.bf16.mxu0 0
        %642 = vmatmul.mubr.bf16.gmra.mxu0 %v607
        %v643 = vpop.f32.mrf.mxu0
        %v644 = vadd.f32 %v604, %v643
        %v645 = vpop.f32.mrf.mxu0
        %v646 = vpop.f32.mrf.mxu0
        %v647 = vpop.f32.mrf.mxu0
        %648 = vdwg.mxu0
        %v649 = vld [vmem:[%s7] sm:$0xff]
        %v650 = vld [vmem:[%s7 + $0x8] sm:$0xff]
        %v651 = vld [vmem:[%s7 + $0x10] sm:$0xff]
        %v652 = vld [vmem:[%s7 + $0x18] sm:$0xff]
        %v653 = vpack.c.bf16 %v650, %v649
        %v654 = vpack.c.bf16 %v652, %v651
        %v655 = vld [vmem:[%s8] sm:$0x1]
        %v657 = vlaneseq
        %v658 = vshrl.u32 %v657, 7
        %v659 = vsub.s32 0, %v658
        %v660 = vrot.slane %v655, %v659
        %v663 = vsel %vm560, %v592, 0
        %665 = vmatprep.subr.bf16.mxu0 0
        %666 = vmatpush1.bf16.msra.mxu0 0
        %667 = vmatprep.subr.bf16.mxu0 0
        %668 = vmatpush1.bf16.msra.mxu0 0
        %669 = vmatprep.subr.bf16.mxu0 0
        %670 = vmatpush1.bf16.msra.mxu0 0
        %671 = vmatprep.subr.bf16.mxu0 0
        %672 = vmatpush1.bf16.msra.mxu0 0
        %673 = vmatprep.subr.bf16.mxu0 0
        %674 = vmatpush1.bf16.msra.mxu0 0
        %675 = vmatprep.subr.bf16.mxu0 0
        %676 = vmatpush1.bf16.msra.mxu0 0
        %677 = vmatprep.subr.bf16.mxu0 0
        %678 = vmatpush1.bf16.msra.mxu0 %v654
        %679 = vmatprep.subr.bf16.mxu0 0
        %680 = vmatpush1.bf16.msra.mxu0 %v653
        %681 = vmatprep.subr.bf16.mxu0 0
        %682 = vmatpush2.bf16.msra.mxu0 0
        %683 = vmatprep.subr.bf16.mxu0 0
        %684 = vmatpush2.bf16.msra.mxu0 0
        %685 = vmatprep.subr.bf16.mxu0 0
        %686 = vmatpush2.bf16.msra.mxu0 0
        %687 = vmatprep.subr.bf16.mxu0 0
        %688 = vmatpush2.bf16.msra.mxu0 0
        %689 = vmatprep.subr.bf16.mxu0 0
        %690 = vmatpush2.bf16.msra.mxu0 0
        %691 = vmatprep.subr.bf16.mxu0 0
        %692 = vmatpush2.bf16.msra.mxu0 0
        %693 = vmatprep.subr.bf16.mxu0 0
        %694 = vmatpush2.bf16.msra.mxu0 0
        %695 = vmatprep.subr.bf16.mxu0 0
        %696 = vmatpush2.bf16.msra.mxu0 0
        %697 = vmatprep.mubr.bf16.mxu0 0
        %698 = vmatmul.mubr.bf16.gmra.mxu0 %v663
        %v699 = vpop.f32.mrf.mxu0
        %v700 = vadd.f32 %v660, %v699
        %v701 = vpop.f32.mrf.mxu0
        %v702 = vpop.f32.mrf.mxu0
        %v703 = vadd.f32 %v660, %v702
        %v704 = vpop.f32.mrf.mxu0
        %705 = vdwg.mxu0
        %v706 = vld [vmem:[#allocation8] sm:$0xff]
        %v707 = vld [vmem:[#allocation8 + $0x8] sm:$0xff]
        %v708 = vld [vmem:[#allocation8 + $0x10] sm:$0xff]
        %v709 = vld [vmem:[#allocation8 + $0x18] sm:$0xff]
        %v710 = vpack.c.bf16 %v707, %v706
        %v711 = vpack.c.bf16 %v709, %v708
        %v712 = vld [vmem:[%s10] sm:$0x1]
        %v714 = vlaneseq
        %v715 = vshrl.u32 %v714, 7
        %v716 = vsub.s32 0, %v715
        %v717 = vrot.slane %v712, %v716
        %719 = vmatprep.subr.bf16.mxu0 0
        %720 = vmatpush1.bf16.msra.mxu0 0
        %721 = vmatprep.subr.bf16.mxu0 0
        %722 = vmatpush1.bf16.msra.mxu0 0
        %723 = vmatprep.subr.bf16.mxu0 0
        %724 = vmatpush1.bf16.msra.mxu0 0
        %725 = vmatprep.subr.bf16.mxu0 0
        %726 = vmatpush1.bf16.msra.mxu0 0
        %727 = vmatprep.subr.bf16.mxu0 0
        %728 = vmatpush1.bf16.msra.mxu0 0
        %729 = vmatprep.subr.bf16.mxu0 0
        %730 = vmatpush1.bf16.msra.mxu0 0
        %731 = vmatprep.subr.bf16.mxu0 0
        %732 = vmatpush1.bf16.msra.mxu0 %v711
        %733 = vmatprep.subr.bf16.mxu0 0
        %734 = vmatpush1.bf16.msra.mxu0 %v710
        %735 = vmatprep.subr.bf16.mxu0 0
        %736 = vmatpush2.bf16.msra.mxu0 0
        %737 = vmatprep.subr.bf16.mxu0 0
        %738 = vmatpush2.bf16.msra.mxu0 0
        %739 = vmatprep.subr.bf16.mxu0 0
        %740 = vmatpush2.bf16.msra.mxu0 0
        %741 = vmatprep.subr.bf16.mxu0 0
        %742 = vmatpush2.bf16.msra.mxu0 0
        %743 = vmatprep.subr.bf16.mxu0 0
        %744 = vmatpush2.bf16.msra.mxu0 0
        %745 = vmatprep.subr.bf16.mxu0 0
        %746 = vmatpush2.bf16.msra.mxu0 0
        %747 = vmatprep.subr.bf16.mxu0 0
        %748 = vmatpush2.bf16.msra.mxu0 0
        %749 = vmatprep.subr.bf16.mxu0 0
        %750 = vmatpush2.bf16.msra.mxu0 0
        %751 = vmatprep.mubr.bf16.mxu0 0
        %752 = vmatmul.mubr.bf16.gmra.mxu0 %v663
        %v753 = vpop.f32.mrf.mxu0
        %v754 = vadd.f32 %v717, %v753
        %v755 = vpop.f32.mrf.mxu0
        %v756 = vpop.f32.mrf.mxu0
        %v757 = vadd.f32 %v717, %v756
        %v758 = vpop.f32.mrf.mxu0
        %759 = vdwg.mxu0
        %v760 = vmul.f32 %v644, 0.35355338
        %v761 = vld [vmem:[%s12] sm:$0x1]
        %v763 = vlaneseq
        %v764 = vshrl.u32 %v763, 7
        %v765 = vsub.s32 0, %v764
        %v766 = vrot.slane %v761, %v765
        %v768 = vadd.f32 %v766, %v555
        %v769 = vpack.c.bf16 %v760, %v760
        %v770 = vpack.c.bf16 %v703, %v700
        %v771 = vpack.c.bf16 %v757, %v754
        %vm772 = vcmask 64512
        %v774 = vsel %vm772, %v769, 0
        %v777 = vsel %vm772, %v770, 0
        %779 = vmatprep.subr.bf16.mxu0 0
        %780 = vmatpush1.bf16.xpose.msra.mxu0 0
        %781 = vmatprep.subr.bf16.mxu0 0
        %782 = vmatpush1.bf16.xpose.msra.mxu0 0
        %783 = vmatprep.subr.bf16.mxu0 0
        %784 = vmatpush1.bf16.xpose.msra.mxu0 0
        %785 = vmatprep.subr.bf16.mxu0 0
        %786 = vmatpush1.bf16.xpose.msra.mxu0 0
        %787 = vmatprep.subr.bf16.mxu0 0
        %788 = vmatpush1.bf16.xpose.msra.mxu0 0
        %789 = vmatprep.subr.bf16.mxu0 0
        %790 = vmatpush1.bf16.xpose.msra.mxu0 0
        %791 = vmatprep.subr.bf16.mxu0 0
        %792 = vmatpush1.bf16.xpose.msra.mxu0 0
        %793 = vmatprep.subr.bf16.mxu0 0
        %794 = vmatpush1.bf16.xpose.msra.mxu0 %v777
        %795 = vmatprep.subr.bf16.mxu0 0
        %796 = vmatpush2.bf16.xpose.msra.mxu0 0
        %797 = vmatprep.subr.bf16.mxu0 0
        %798 = vmatpush2.bf16.xpose.msra.mxu0 0
        %799 = vmatprep.subr.bf16.mxu0 0
        %800 = vmatpush2.bf16.xpose.msra.mxu0 0
        %801 = vmatprep.subr.bf16.mxu0 0
        %802 = vmatpush2.bf16.xpose.msra.mxu0 0
        %803 = vmatprep.subr.bf16.mxu0 0
        %804 = vmatpush2.bf16.xpose.msra.mxu0 0
        %805 = vmatprep.subr.bf16.mxu0 0
        %806 = vmatpush2.bf16.xpose.msra.mxu0 0
        %807 = vmatprep.subr.bf16.mxu0 0
        %808 = vmatpush2.bf16.xpose.msra.mxu0 0
        %809 = vmatprep.subr.bf16.mxu0 0
        %810 = vmatpush2.bf16.xpose.msra.mxu0 0
        %811 = vmatprep.mubr.bf16.mxu0 0
        %812 = vmatmul.mubr.bf16.gmra.mxu0 %v774
        %v813 = vpop.f32.mrf.mxu0
        %v814 = vadd.f32 0.0, %v813
        %v815 = vpop.f32.mrf.mxu0
        %v816 = vpop.f32.mrf.mxu0
        %v817 = vpop.f32.mrf.mxu0
        %818 = vdwg.mxu0
        %v819 = vsel %vm559, %v814, -1e+09
        %vm820 = vcmask 97280
        %v821 = vsel %vm820, %v819, -inf
        %822 = vmax.xlane.f32.xlu0 %v821
        %v823 = vpop.xlane.xlu0 %822
        %v824 = vsub.f32 %v819, %v823
        %v825 = vmul.f32 %v824, 1.442695
        %v826 = vpow.pop %v825
        %v827 = vsel %vm820, %v826, 0.0
        %828 = vadd.xlane.f32.xlu0 %v827
        %v829 = vpop.xlane.xlu0 %828
        %v830 = vrcp.pop %v829
        %v831 = vmul.f32 %v826, %v830
        %v832 = vpack.c.bf16 %v831, %v831
        %v834 = vsel %vm820, %v832, 0
        %vm836 = vcmask 1045504
        %v838 = vsel %vm836, %v771, 0
        %840 = vmatprep.subr.bf16.mxu0 0
        %841 = vmatpush1.bf16.msra.mxu0 0
        %842 = vmatprep.subr.bf16.mxu0 0
        %843 = vmatpush1.bf16.msra.mxu0 0
        %844 = vmatprep.subr.bf16.mxu0 0
        %845 = vmatpush1.bf16.msra.mxu0 0
        %846 = vmatprep.subr.bf16.mxu0 0
        %847 = vmatpush1.bf16.msra.mxu0 0
        %848 = vmatprep.subr.bf16.mxu0 0
        %849 = vmatpush1.bf16.msra.mxu0 0
        %850 = vmatprep.subr.bf16.mxu0 0
        %851 = vmatpush1.bf16.msra.mxu0 0
        %852 = vmatprep.subr.bf16.mxu0 0
        %853 = vmatpush1.bf16.msra.mxu0 0
        %854 = vmatprep.subr.bf16.mxu0 0
        %855 = vmatpush1.bf16.msra.mxu0 %v838
        %856 = vmatprep.subr.bf16.mxu0 0
        %857 = vmatpush2.bf16.msra.mxu0 0
        %858 = vmatprep.subr.bf16.mxu0 0
        %859 = vmatpush2.bf16.msra.mxu0 0
        %860 = vmatprep.subr.bf16.mxu0 0
        %861 = vmatpush2.bf16.msra.mxu0 0
        %862 = vmatprep.subr.bf16.mxu0 0
        %863 = vmatpush2.bf16.msra.mxu0 0
        %864 = vmatprep.subr.bf16.mxu0 0
        %865 = vmatpush2.bf16.msra.mxu0 0
        %866 = vmatprep.subr.bf16.mxu0 0
        %867 = vmatpush2.bf16.msra.mxu0 0
        %868 = vmatprep.subr.bf16.mxu0 0
        %869 = vmatpush2.bf16.msra.mxu0 0
        %870 = vmatprep.subr.bf16.mxu0 0
        %871 = vmatpush2.bf16.msra.mxu0 0
        %872 = vmatprep.mubr.bf16.mxu0 0
        %873 = vmatmul.mubr.bf16.gmra.mxu0 %v834
        %v874 = vpop.f32.mrf.mxu0
        %v875 = vadd.f32 0.0, %v874
        %v876 = vpop.f32.mrf.mxu0
        %v877 = vpop.f32.mrf.mxu0
        %v878 = vpop.f32.mrf.mxu0
        %879 = vdwg.mxu0
        %v880 = vld [vmem:[#allocation10] sm:$0xff]
        %v881 = vpack.c.bf16 %v880, %v880
        %v882 = vpack.c.bf16 %v875, %v875
        %v884 = vsel %vm772, %v882, 0
        %vm886 = vcmask 1043456
        %v888 = vsel %vm886, %v881, 0
        %890 = vmatprep.subr.bf16.mxu0 0
        %891 = vmatpush1.bf16.msra.mxu0 0
        %892 = vmatprep.subr.bf16.mxu0 0
        %893 = vmatpush1.bf16.msra.mxu0 0
        %894 = vmatprep.subr.bf16.mxu0 0
        %895 = vmatpush1.bf16.msra.mxu0 0
        %896 = vmatprep.subr.bf16.mxu0 0
        %897 = vmatpush1.bf16.msra.mxu0 0
        %898 = vmatprep.subr.bf16.mxu0 0
        %899 = vmatpush1.bf16.msra.mxu0 0
        %900 = vmatprep.subr.bf16.mxu0 0
        %901 = vmatpush1.bf16.msra.mxu0 0
        %902 = vmatprep.subr.bf16.mxu0 0
        %903 = vmatpush1.bf16.msra.mxu0 0
        %904 = vmatprep.subr.bf16.mxu0 0
        %905 = vmatpush1.bf16.msra.mxu0 %v888
        %906 = vmatprep.subr.bf16.mxu0 0
        %907 = vmatpush2.bf16.msra.mxu0 0
        %908 = vmatprep.subr.bf16.mxu0 0
        %909 = vmatpush2.bf16.msra.mxu0 0
        %910 = vmatprep.subr.bf16.mxu0 0
        %911 = vmatpush2.bf16.msra.mxu0 0
        %912 = vmatprep.subr.bf16.mxu0 0
        %913 = vmatpush2.bf16.msra.mxu0 0
        %914 = vmatprep.subr.bf16.mxu0 0
        %915 = vmatpush2.bf16.msra.mxu0 0
        %916 = vmatprep.subr.bf16.mxu0 0
        %917 = vmatpush2.bf16.msra.mxu0 0
        %918 = vmatprep.subr.bf16.mxu0 0
        %919 = vmatpush2.bf16.msra.mxu0 0
        %920 = vmatprep.subr.bf16.mxu0 0
        %921 = vmatpush2.bf16.msra.mxu0 0
        %922 = vmatprep.mubr.bf16.mxu0 0
        %923 = vmatmul.mubr.bf16.gmra.mxu0 %v884
        %v924 = vpop.f32.mrf.mxu0
        %v925 = vadd.f32 0.0, %v924
        %v926 = vpop.f32.mrf.mxu0
        %v927 = vpop.f32.mrf.mxu0
        %v928 = vpop.f32.mrf.mxu0
        %929 = vdwg.mxu0
        %v930 = vadd.f32 %v768, %v925
        %932 = vrot.lane.b32.xlu0 %v769, 120
        %v933 = vpop.permute.xlu0 %932
        %935 = vrot.lane.b32.xlu0 %v770, 120
        %v936 = vpop.permute.xlu0 %935
        %v938 = vsel %vm772, %v933, 0
        %v941 = vsel %vm772, %v936, 0
        %943 = vmatprep.subr.bf16.mxu0 0
        %944 = vmatpush1.bf16.xpose.msra.mxu0 0
        %945 = vmatprep.subr.bf16.mxu0 0
        %946 = vmatpush1.bf16.xpose.msra.mxu0 0
        %947 = vmatprep.subr.bf16.mxu0 0
        %948 = vmatpush1.bf16.xpose.msra.mxu0 0
        %949 = vmatprep.subr.bf16.mxu0 0
        %950 = vmatpush1.bf16.xpose.msra.mxu0 0
        %951 = vmatprep.subr.bf16.mxu0 0
        %952 = vmatpush1.bf16.xpose.msra.mxu0 0
        %953 = vmatprep.subr.bf16.mxu0 0
        %954 = vmatpush1.bf16.xpose.msra.mxu0 0
        %955 = vmatprep.subr.bf16.mxu0 0
        %956 = vmatpush1.bf16.xpose.msra.mxu0 0
        %957 = vmatprep.subr.bf16.mxu0 0
        %958 = vmatpush1.bf16.xpose.msra.mxu0 %v941
        %959 = vmatprep.subr.bf16.mxu0 0
        %960 = vmatpush2.bf16.xpose.msra.mxu0 0
        %961 = vmatprep.subr.bf16.mxu0 0
        %962 = vmatpush2.bf16.xpose.msra.mxu0 0
        %963 = vmatprep.subr.bf16.mxu0 0
        %964 = vmatpush2.bf16.xpose.msra.mxu0 0
        %965 = vmatprep.subr.bf16.mxu0 0
        %966 = vmatpush2.bf16.xpose.msra.mxu0 0
        %967 = vmatprep.subr.bf16.mxu0 0
        %968 = vmatpush2.bf16.xpose.msra.mxu0 0
        %969 = vmatprep.subr.bf16.mxu0 0
        %970 = vmatpush2.bf16.xpose.msra.mxu0 0
        %971 = vmatprep.subr.bf16.mxu0 0
        %972 = vmatpush2.bf16.xpose.msra.mxu0 0
        %973 = vmatprep.subr.bf16.mxu0 0
        %974 = vmatpush2.bf16.xpose.msra.mxu0 0
        %975 = vmatprep.mubr.bf16.mxu0 0
        %976 = vmatmul.mubr.bf16.gmra.mxu0 %v938
        %v977 = vpop.f32.mrf.mxu0
        %v978 = vadd.f32 0.0, %v977
        %v979 = vpop.f32.mrf.mxu0
        %v980 = vpop.f32.mrf.mxu0
        %v981 = vpop.f32.mrf.mxu0
        %982 = vdwg.mxu0
        %v983 = vsel %vm559, %v978, -1e+09
        %v984 = vsel %vm820, %v983, -inf
        %985 = vmax.xlane.f32.xlu0 %v984
        %v986 = vpop.xlane.xlu0 %985
        %v987 = vsub.f32 %v983, %v986
        %v988 = vmul.f32 %v987, 1.442695
        %v989 = vpow.pop %v988
        %v990 = vsel %vm820, %v989, 0.0
        %991 = vadd.xlane.f32.xlu0 %v990
        %v992 = vpop.xlane.xlu0 %991
        %v993 = vrcp.pop %v992
        %v994 = vmul.f32 %v989, %v993
        %v995 = vpack.c.bf16 %v994, %v994
        %997 = vrot.lane.b32.xlu0 %v771, 120
        %v998 = vpop.permute.xlu0 %997
        %v1000 = vsel %vm820, %v995, 0
        %v1003 = vsel %vm836, %v998, 0
        %1005 = vmatprep.subr.bf16.mxu0 0
        %1006 = vmatpush1.bf16.msra.mxu0 0
        %1007 = vmatprep.subr.bf16.mxu0 0
        %1008 = vmatpush1.bf16.msra.mxu0 0
        %1009 = vmatprep.subr.bf16.mxu0 0
        %1010 = vmatpush1.bf16.msra.mxu0 0
        %1011 = vmatprep.subr.bf16.mxu0 0
        %1012 = vmatpush1.bf16.msra.mxu0 0
        %1013 = vmatprep.subr.bf16.mxu0 0
        %1014 = vmatpush1.bf16.msra.mxu0 0
        %1015 = vmatprep.subr.bf16.mxu0 0
        %1016 = vmatpush1.bf16.msra.mxu0 0
        %1017 = vmatprep.subr.bf16.mxu0 0
        %1018 = vmatpush1.bf16.msra.mxu0 0
        %1019 = vmatprep.subr.bf16.mxu0 0
        %1020 = vmatpush1.bf16.msra.mxu0 %v1003
        %1021 = vmatprep.subr.bf16.mxu0 0
        %1022 = vmatpush2.bf16.msra.mxu0 0
        %1023 = vmatprep.subr.bf16.mxu0 0
        %1024 = vmatpush2.bf16.msra.mxu0 0
        %1025 = vmatprep.subr.bf16.mxu0 0
        %1026 = vmatpush2.bf16.msra.mxu0 0
        %1027 = vmatprep.subr.bf16.mxu0 0
        %1028 = vmatpush2.bf16.msra.mxu0 0
        %1029 = vmatprep.subr.bf16.mxu0 0
        %1030 = vmatpush2.bf16.msra.mxu0 0
        %1031 = vmatprep.subr.bf16.mxu0 0
        %1032 = vmatpush2.bf16.msra.mxu0 0
        %1033 = vmatprep.subr.bf16.mxu0 0
        %1034 = vmatpush2.bf16.msra.mxu0 0
        %1035 = vmatprep.subr.bf16.mxu0 0
        %1036 = vmatpush2.bf16.msra.mxu0 0
        %1037 = vmatprep.mubr.bf16.mxu0 0
        %1038 = vmatmul.mubr.bf16.gmra.mxu0 %v1000
        %v1039 = vpop.f32.mrf.mxu0
        %v1040 = vadd.f32 0.0, %v1039
        %v1041 = vpop.f32.mrf.mxu0
        %v1042 = vpop.f32.mrf.mxu0
        %v1043 = vpop.f32.mrf.mxu0
        %1044 = vdwg.mxu0
        %v1045 = vld [vmem:[#allocation10 + $0x8] sm:$0xff]
        %v1046 = vpack.c.bf16 %v1045, %v1045
        %v1047 = vpack.c.bf16 %v1040, %v1040
        %v1049 = vsel %vm772, %v1047, 0
        %v1052 = vsel %vm886, %v1046, 0
        %1054 = vmatprep.subr.bf16.mxu0 0
        %1055 = vmatpush1.bf16.msra.mxu0 0
        %1056 = vmatprep.subr.bf16.mxu0 0
        %1057 = vmatpush1.bf16.msra.mxu0 0
        %1058 = vmatprep.subr.bf16.mxu0 0
        %1059 = vmatpush1.bf16.msra.mxu0 0
        %1060 = vmatprep.subr.bf16.mxu0 0
        %1061 = vmatpush1.bf16.msra.mxu0 0
        %1062 = vmatprep.subr.bf16.mxu0 0
        %1063 = vmatpush1.bf16.msra.mxu0 0
        %1064 = vmatprep.subr.bf16.mxu0 0
        %1065 = vmatpush1.bf16.msra.mxu0 0
        %1066 = vmatprep.subr.bf16.mxu0 0
        %1067 = vmatpush1.bf16.msra.mxu0 0
        %1068 = vmatprep.subr.bf16.mxu0 0
        %1069 = vmatpush1.bf16.msra.mxu0 %v1052
        %1070 = vmatprep.subr.bf16.mxu0 0
        %1071 = vmatpush2.bf16.msra.mxu0 0
        %1072 = vmatprep.subr.bf16.mxu0 0
        %1073 = vmatpush2.bf16.msra.mxu0 0
        %1074 = vmatprep.subr.bf16.mxu0 0
        %1075 = vmatpush2.bf16.msra.mxu0 0
        %1076 = vmatprep.subr.bf16.mxu0 0
        %1077 = vmatpush2.bf16.msra.mxu0 0
        %1078 = vmatprep.subr.bf16.mxu0 0
        %1079 = vmatpush2.bf16.msra.mxu0 0
        %1080 = vmatprep.subr.bf16.mxu0 0
        %1081 = vmatpush2.bf16.msra.mxu0 0
        %1082 = vmatprep.subr.bf16.mxu0 0
        %1083 = vmatpush2.bf16.msra.mxu0 0
        %1084 = vmatprep.subr.bf16.mxu0 0
        %1085 = vmatpush2.bf16.msra.mxu0 0
        %1086 = vmatprep.mubr.bf16.mxu0 0
        %1087 = vmatmul.mubr.bf16.gmra.mxu0 %v1049
        %v1088 = vpop.f32.mrf.mxu0
        %v1089 = vadd.f32 0.0, %v1088
        %v1090 = vpop.f32.mrf.mxu0
        %v1091 = vpop.f32.mrf.mxu0
        %v1092 = vpop.f32.mrf.mxu0
        %1093 = vdwg.mxu0
        %v1094 = vadd.f32 %v930, %v1089
        %1095 = vrot.lane.b32.xlu0 %v769, 112
        %v1096 = vpop.permute.xlu0 %1095
        %1097 = vrot.lane.b32.xlu0 %v770, 112
        %v1098 = vpop.permute.xlu0 %1097
        %v1100 = vsel %vm772, %v1096, 0
        %v1103 = vsel %vm772, %v1098, 0
        %1105 = vmatprep.subr.bf16.mxu0 0
        %1106 = vmatpush1.bf16.xpose.msra.mxu0 0
        %1107 = vmatprep.subr.bf16.mxu0 0
        %1108 = vmatpush1.bf16.xpose.msra.mxu0 0
        %1109 = vmatprep.subr.bf16.mxu0 0
        %1110 = vmatpush1.bf16.xpose.msra.mxu0 0
        %1111 = vmatprep.subr.bf16.mxu0 0
        %1112 = vmatpush1.bf16.xpose.msra.mxu0 0
        %1113 = vmatprep.subr.bf16.mxu0 0
        %1114 = vmatpush1.bf16.xpose.msra.mxu0 0
        %1115 = vmatprep.subr.bf16.mxu0 0
        %1116 = vmatpush1.bf16.xpose.msra.mxu0 0
        %1117 = vmatprep.subr.bf16.mxu0 0
        %1118 = vmatpush1.bf16.xpose.msra.mxu0 0
        %1119 = vmatprep.subr.bf16.mxu0 0
        %1120 = vmatpush1.bf16.xpose.msra.mxu0 %v1103
        %1121 = vmatprep.subr.bf16.mxu0 0
        %1122 = vmatpush2.bf16.xpose.msra.mxu0 0
        %1123 = vmatprep.subr.bf16.mxu0 0
        %1124 = vmatpush2.bf16.xpose.msra.mxu0 0
        %1125 = vmatprep.subr.bf16.mxu0 0
        %1126 = vmatpush2.bf16.xpose.msra.mxu0 0
        %1127 = vmatprep.subr.bf16.mxu0 0
        %1128 = vmatpush2.bf16.xpose.msra.mxu0 0
        %1129 = vmatprep.subr.bf16.mxu0 0
        %1130 = vmatpush2.bf16.xpose.msra.mxu0 0
        %1131 = vmatprep.subr.bf16.mxu0 0
        %1132 = vmatpush2.bf16.xpose.msra.mxu0 0
        %1133 = vmatprep.subr.bf16.mxu0 0
        %1134 = vmatpush2.bf16.xpose.msra.mxu0 0
        %1135 = vmatprep.subr.bf16.mxu0 0
        %1136 = vmatpush2.bf16.xpose.msra.mxu0 0
        %1137 = vmatprep.mubr.bf16.mxu0 0
        %1138 = vmatmul.mubr.bf16.gmra.mxu0 %v1100
        %v1139 = vpop.f32.mrf.mxu0
        %v1140 = vadd.f32 0.0, %v1139
        %v1141 = vpop.f32.mrf.mxu0
        %v1142 = vpop.f32.mrf.mxu0
        %v1143 = vpop.f32.mrf.mxu0
        %1144 = vdwg.mxu0
        %v1145 = vsel %vm559, %v1140, -1e+09
        %v1146 = vsel %vm820, %v1145, -inf
        %1147 = vmax.xlane.f32.xlu0 %v1146
        %v1148 = vpop.xlane.xlu0 %1147
        %v1149 = vsub.f32 %v1145, %v1148
        %v1150 = vmul.f32 %v1149, 1.442695
        %v1151 = vpow.pop %v1150
        %v1152 = vsel %vm820, %v1151, 0.0
        %1153 = vadd.xlane.f32.xlu0 %v1152
        %v1154 = vpop.xlane.xlu0 %1153
        %v1155 = vrcp.pop %v1154
        %v1156 = vmul.f32 %v1151, %v1155
        %v1157 = vpack.c.bf16 %v1156, %v1156
        %1158 = vrot.lane.b32.xlu0 %v771, 112
        %v1159 = vpop.permute.xlu0 %1158
        %v1161 = vsel %vm820, %v1157, 0
        %v1164 = vsel %vm836, %v1159, 0
        %1166 = vmatprep.subr.bf16.mxu0 0
        %1167 = vmatpush1.bf16.msra.mxu0 0
        %1168 = vmatprep.subr.bf16.mxu0 0
        %1169 = vmatpush1.bf16.msra.mxu0 0
        %1170 = vmatprep.subr.bf16.mxu0 0
        %1171 = vmatpush1.bf16.msra.mxu0 0
        %1172 = vmatprep.subr.bf16.mxu0 0
        %1173 = vmatpush1.bf16.msra.mxu0 0
        %1174 = vmatprep.subr.bf16.mxu0 0
        %1175 = vmatpush1.bf16.msra.mxu0 0
        %1176 = vmatprep.subr.bf16.mxu0 0
        %1177 = vmatpush1.bf16.msra.mxu0 0
        %1178 = vmatprep.subr.bf16.mxu0 0
        %1179 = vmatpush1.bf16.msra.mxu0 0
        %1180 = vmatprep.subr.bf16.mxu0 0
        %1181 = vmatpush1.bf16.msra.mxu0 %v1164
        %1182 = vmatprep.subr.bf16.mxu0 0
        %1183 = vmatpush2.bf16.msra.mxu0 0
        %1184 = vmatprep.subr.bf16.mxu0 0
        %1185 = vmatpush2.bf16.msra.mxu0 0
        %1186 = vmatprep.subr.bf16.mxu0 0
        %1187 = vmatpush2.bf16.msra.mxu0 0
        %1188 = vmatprep.subr.bf16.mxu0 0
        %1189 = vmatpush2.bf16.msra.mxu0 0
        %1190 = vmatprep.subr.bf16.mxu0 0
        %1191 = vmatpush2.bf16.msra.mxu0 0
        %1192 = vmatprep.subr.bf16.mxu0 0
        %1193 = vmatpush2.bf16.msra.mxu0 0
        %1194 = vmatprep.subr.bf16.mxu0 0
        %1195 = vmatpush2.bf16.msra.mxu0 0
        %1196 = vmatprep.subr.bf16.mxu0 0
        %1197 = vmatpush2.bf16.msra.mxu0 0
        %1198 = vmatprep.mubr.bf16.mxu0 0
        %1199 = vmatmul.mubr.bf16.gmra.mxu0 %v1161
        %v1200 = vpop.f32.mrf.mxu0
        %v1201 = vadd.f32 0.0, %v1200
        %v1202 = vpop.f32.mrf.mxu0
        %v1203 = vpop.f32.mrf.mxu0
        %v1204 = vpop.f32.mrf.mxu0
        %1205 = vdwg.mxu0
        %v1206 = vld [vmem:[#allocation10 + $0x10] sm:$0xff]
        %v1207 = vpack.c.bf16 %v1206, %v1206
        %v1208 = vpack.c.bf16 %v1201, %v1201
        %v1210 = vsel %vm772, %v1208, 0
        %v1213 = vsel %vm886, %v1207, 0
        %1215 = vmatprep.subr.bf16.mxu0 0
        %1216 = vmatpush1.bf16.msra.mxu0 0
        %1217 = vmatprep.subr.bf16.mxu0 0
        %1218 = vmatpush1.bf16.msra.mxu0 0
        %1219 = vmatprep.subr.bf16.mxu0 0
        %1220 = vmatpush1.bf16.msra.mxu0 0
        %1221 = vmatprep.subr.bf16.mxu0 0
        %1222 = vmatpush1.bf16.msra.mxu0 0
        %1223 = vmatprep.subr.bf16.mxu0 0
        %1224 = vmatpush1.bf16.msra.mxu0 0
        %1225 = vmatprep.subr.bf16.mxu0 0
        %1226 = vmatpush1.bf16.msra.mxu0 0
        %1227 = vmatprep.subr.bf16.mxu0 0
        %1228 = vmatpush1.bf16.msra.mxu0 0
        %1229 = vmatprep.subr.bf16.mxu0 0
        %1230 = vmatpush1.bf16.msra.mxu0 %v1213
        %1231 = vmatprep.subr.bf16.mxu0 0
        %1232 = vmatpush2.bf16.msra.mxu0 0
        %1233 = vmatprep.subr.bf16.mxu0 0
        %1234 = vmatpush2.bf16.msra.mxu0 0
        %1235 = vmatprep.subr.bf16.mxu0 0
        %1236 = vmatpush2.bf16.msra.mxu0 0
        %1237 = vmatprep.subr.bf16.mxu0 0
        %1238 = vmatpush2.bf16.msra.mxu0 0
        %1239 = vmatprep.subr.bf16.mxu0 0
        %1240 = vmatpush2.bf16.msra.mxu0 0
        %1241 = vmatprep.subr.bf16.mxu0 0
        %1242 = vmatpush2.bf16.msra.mxu0 0
        %1243 = vmatprep.subr.bf16.mxu0 0
        %1244 = vmatpush2.bf16.msra.mxu0 0
        %1245 = vmatprep.subr.bf16.mxu0 0
        %1246 = vmatpush2.bf16.msra.mxu0 0
        %1247 = vmatprep.mubr.bf16.mxu0 0
        %1248 = vmatmul.mubr.bf16.gmra.mxu0 %v1210
        %v1249 = vpop.f32.mrf.mxu0
        %v1250 = vadd.f32 0.0, %v1249
        %v1251 = vpop.f32.mrf.mxu0
        %v1252 = vpop.f32.mrf.mxu0
        %v1253 = vpop.f32.mrf.mxu0
        %1254 = vdwg.mxu0
        %v1255 = vadd.f32 %v1094, %v1250
        %1256 = vrot.lane.b32.xlu0 %v769, 104
        %v1257 = vpop.permute.xlu0 %1256
        %1258 = vrot.lane.b32.xlu0 %v770, 104
        %v1259 = vpop.permute.xlu0 %1258
        %v1261 = vsel %vm772, %v1257, 0
        %v1264 = vsel %vm772, %v1259, 0
        %1266 = vmatprep.subr.bf16.mxu0 0
        %1267 = vmatpush1.bf16.xpose.msra.mxu0 0
        %1268 = vmatprep.subr.bf16.mxu0 0
        %1269 = vmatpush1.bf16.xpose.msra.mxu0 0
        %1270 = vmatprep.subr.bf16.mxu0 0
        %1271 = vmatpush1.bf16.xpose.msra.mxu0 0
        %1272 = vmatprep.subr.bf16.mxu0 0
        %1273 = vmatpush1.bf16.xpose.msra.mxu0 0
        %1274 = vmatprep.subr.bf16.mxu0 0
        %1275 = vmatpush1.bf16.xpose.msra.mxu0 0
        %1276 = vmatprep.subr.bf16.mxu0 0
        %1277 = vmatpush1.bf16.xpose.msra.mxu0 0
        %1278 = vmatprep.subr.bf16.mxu0 0
        %1279 = vmatpush1.bf16.xpose.msra.mxu0 0
        %1280 = vmatprep.subr.bf16.mxu0 0
        %1281 = vmatpush1.bf16.xpose.msra.mxu0 %v1264
        %1282 = vmatprep.subr.bf16.mxu0 0
        %1283 = vmatpush2.bf16.xpose.msra.mxu0 0
        %1284 = vmatprep.subr.bf16.mxu0 0
        %1285 = vmatpush2.bf16.xpose.msra.mxu0 0
        %1286 = vmatprep.subr.bf16.mxu0 0
        %1287 = vmatpush2.bf16.xpose.msra.mxu0 0
        %1288 = vmatprep.subr.bf16.mxu0 0
        %1289 = vmatpush2.bf16.xpose.msra.mxu0 0
        %1290 = vmatprep.subr.bf16.mxu0 0
        %1291 = vmatpush2.bf16.xpose.msra.mxu0 0
        %1292 = vmatprep.subr.bf16.mxu0 0
        %1293 = vmatpush2.bf16.xpose.msra.mxu0 0
        %1294 = vmatprep.subr.bf16.mxu0 0
        %1295 = vmatpush2.bf16.xpose.msra.mxu0 0
        %1296 = vmatprep.subr.bf16.mxu0 0
        %1297 = vmatpush2.bf16.xpose.msra.mxu0 0
        %1298 = vmatprep.mubr.bf16.mxu0 0
        %1299 = vmatmul.mubr.bf16.gmra.mxu0 %v1261
        %v1300 = vpop.f32.mrf.mxu0
        %v1301 = vadd.f32 0.0, %v1300
        %v1302 = vpop.f32.mrf.mxu0
        %v1303 = vpop.f32.mrf.mxu0
        %v1304 = vpop.f32.mrf.mxu0
        %1305 = vdwg.mxu0
        %v1306 = vsel %vm559, %v1301, -1e+09
        %v1307 = vsel %vm820, %v1306, -inf
        %1308 = vmax.xlane.f32.xlu0 %v1307
        %v1309 = vpop.xlane.xlu0 %1308
        %v1310 = vsub.f32 %v1306, %v1309
        %v1311 = vmul.f32 %v1310, 1.442695
        %v1312 = vpow.pop %v1311
        %v1313 = vsel %vm820, %v1312, 0.0
        %1314 = vadd.xlane.f32.xlu0 %v1313
        %v1315 = vpop.xlane.xlu0 %1314
        %v1316 = vrcp.pop %v1315
        %v1317 = vmul.f32 %v1312, %v1316
        %v1318 = vpack.c.bf16 %v1317, %v1317
        %1319 = vrot.lane.b32.xlu0 %v771, 104
        %v1320 = vpop.permute.xlu0 %1319
        %v1322 = vsel %vm820, %v1318, 0
        %v1325 = vsel %vm836, %v1320, 0
        %1327 = vmatprep.subr.bf16.mxu0 0
        %1328 = vmatpush1.bf16.msra.mxu0 0
        %1329 = vmatprep.subr.bf16.mxu0 0
        %1330 = vmatpush1.bf16.msra.mxu0 0
        %1331 = vmatprep.subr.bf16.mxu0 0
        %1332 = vmatpush1.bf16.msra.mxu0 0
        %1333 = vmatprep.subr.bf16.mxu0 0
        %1334 = vmatpush1.bf16.msra.mxu0 0
        %1335 = vmatprep.subr.bf16.mxu0 0
        %1336 = vmatpush1.bf16.msra.mxu0 0
        %1337 = vmatprep.subr.bf16.mxu0 0
        %1338 = vmatpush1.bf16.msra.mxu0 0
        %1339 = vmatprep.subr.bf16.mxu0 0
        %1340 = vmatpush1.bf16.msra.mxu0 0
        %1341 = vmatprep.subr.bf16.mxu0 0
        %1342 = vmatpush1.bf16.msra.mxu0 %v1325
        %1343 = vmatprep.subr.bf16.mxu0 0
        %1344 = vmatpush2.bf16.msra.mxu0 0
        %1345 = vmatprep.subr.bf16.mxu0 0
        %1346 = vmatpush2.bf16.msra.mxu0 0
        %1347 = vmatprep.subr.bf16.mxu0 0
        %1348 = vmatpush2.bf16.msra.mxu0 0
        %1349 = vmatprep.subr.bf16.mxu0 0
        %1350 = vmatpush2.bf16.msra.mxu0 0
        %1351 = vmatprep.subr.bf16.mxu0 0
        %1352 = vmatpush2.bf16.msra.mxu0 0
        %1353 = vmatprep.subr.bf16.mxu0 0
        %1354 = vmatpush2.bf16.msra.mxu0 0
        %1355 = vmatprep.subr.bf16.mxu0 0
        %1356 = vmatpush2.bf16.msra.mxu0 0
        %1357 = vmatprep.subr.bf16.mxu0 0
        %1358 = vmatpush2.bf16.msra.mxu0 0
        %1359 = vmatprep.mubr.bf16.mxu0 0
        %1360 = vmatmul.mubr.bf16.gmra.mxu0 %v1322
        %v1361 = vpop.f32.mrf.mxu0
        %v1362 = vadd.f32 0.0, %v1361
        %v1363 = vpop.f32.mrf.mxu0
        %v1364 = vpop.f32.mrf.mxu0
        %v1365 = vpop.f32.mrf.mxu0
        %1366 = vdwg.mxu0
        %v1367 = vld [vmem:[#allocation10 + $0x18] sm:$0xff]
        %v1368 = vpack.c.bf16 %v1367, %v1367
        %v1369 = vpack.c.bf16 %v1362, %v1362
        %v1371 = vsel %vm772, %v1369, 0
        %v1374 = vsel %vm886, %v1368, 0
        %1376 = vmatprep.subr.bf16.mxu0 0
        %1377 = vmatpush1.bf16.msra.mxu0 0
        %1378 = vmatprep.subr.bf16.mxu0 0
        %1379 = vmatpush1.bf16.msra.mxu0 0
        %1380 = vmatprep.subr.bf16.mxu0 0
        %1381 = vmatpush1.bf16.msra.mxu0 0
        %1382 = vmatprep.subr.bf16.mxu0 0
        %1383 = vmatpush1.bf16.msra.mxu0 0
        %1384 = vmatprep.subr.bf16.mxu0 0
        %1385 = vmatpush1.bf16.msra.mxu0 0
        %1386 = vmatprep.subr.bf16.mxu0 0
        %1387 = vmatpush1.bf16.msra.mxu0 0
        %1388 = vmatprep.subr.bf16.mxu0 0
        %1389 = vmatpush1.bf16.msra.mxu0 0
        %1390 = vmatprep.subr.bf16.mxu0 0
        %1391 = vmatpush1.bf16.msra.mxu0 %v1374
        %1392 = vmatprep.subr.bf16.mxu0 0
        %1393 = vmatpush2.bf16.msra.mxu0 0
        %1394 = vmatprep.subr.bf16.mxu0 0
        %1395 = vmatpush2.bf16.msra.mxu0 0
        %1396 = vmatprep.subr.bf16.mxu0 0
        %1397 = vmatpush2.bf16.msra.mxu0 0
        %1398 = vmatprep.subr.bf16.mxu0 0
        %1399 = vmatpush2.bf16.msra.mxu0 0
        %1400 = vmatprep.subr.bf16.mxu0 0
        %1401 = vmatpush2.bf16.msra.mxu0 0
        %1402 = vmatprep.subr.bf16.mxu0 0
        %1403 = vmatpush2.bf16.msra.mxu0 0
        %1404 = vmatprep.subr.bf16.mxu0 0
        %1405 = vmatpush2.bf16.msra.mxu0 0
        %1406 = vmatprep.subr.bf16.mxu0 0
        %1407 = vmatpush2.bf16.msra.mxu0 0
        %1408 = vmatprep.mubr.bf16.mxu0 0
        %1409 = vmatmul.mubr.bf16.gmra.mxu0 %v1371
        %v1410 = vpop.f32.mrf.mxu0
        %v1411 = vadd.f32 0.0, %v1410
        %v1412 = vpop.f32.mrf.mxu0
        %v1413 = vpop.f32.mrf.mxu0
        %v1414 = vpop.f32.mrf.mxu0
        %1415 = vdwg.mxu0
        %v1416 = vadd.f32 %v1255, %v1411
        %1417 = vst.msk [vmem:[%s548] sm:$0xff] %vm560, %v1416
        %s1418 = sand.u32 %s330, 1
        %s1419 = scalar_lea.sflag [#allocation4], %s1418
        %s1420 = sand.u32 %s330, 1
        %s1421 = smul.addr %s1420, 8
        %s1422 = scalar_lea.vmem [#allocation11], %s1421
        // Predicated region
        $region93: #{tpu_custom_call.1} parent=71 // pred_check
          %p1423 = pneg %p340
        $region94: #{tpu_custom_call.1} parent=71 // pred_check_branch
          %1425 = sbr.rel (%p1423) target = $region96
        $region95: #{tpu_custom_call.1} parent=71 // pred_region
          %s1427 = ssub.s32 128, 128
          %1428 = vsyncadd %s1419, %s1427
          %s1429 = smul.addr %s34, 128
          %s1430 = scalar_lea.hbm %s13, %s1429
          %s1432 = sshll.u32 %s1422, 4
          %s1433 = int_to_ptr.vmem [resolvable:$true] %s1432
          %1435 = dma.vmem_to_hbm [thread:$0]  %s1433, 128, %s1430, %s1419
        $region96: #{tpu_custom_call.1} parent=71 // pred_fallthru
          _
      $region72: #{tpu_custom_call.1} parent=5 // pred_fallthru
        _
      %p1436 = scmp.le.s32.totalorder 2, %s29
      // Predicated region
      $region97: #{tpu_custom_call.1} parent=5 // pred_check
        %p1437 = pneg %p1436
      $region98: #{tpu_custom_call.1} parent=5 // pred_check_branch
        %1439 = sbr.rel (%p1437) target = $region100
      $region99: #{tpu_custom_call.1} parent=5 // pred_region
        %s1440 = ssub.s32 %s29, 2
        // Predicated region
        $region101: #{tpu_custom_call.1} parent=99 // pred_check
          %p1441 = pneg %p346
        $region102: #{tpu_custom_call.1} parent=99 // pred_check_branch
          %1443 = sbr.rel (%p1441) target = $region104
        $region103: #{tpu_custom_call.1} parent=99 // pred_region
          %s1444 = sand.u32 %s331, 1
          %s1445 = scalar_lea.sflag [#allocation4], %s1444
          %s1446 = sand.u32 %s331, 1
          %s1447 = smul.addr %s1446, 8
          %s1448 = scalar_lea.vmem [#allocation11], %s1447
          %1449 = dma.done %s1445, 128
        $region104: #{tpu_custom_call.1} parent=99 // pred_fallthru
          _
      $region100: #{tpu_custom_call.1} parent=5 // pred_fallthru
        _
    $region6: #{tpu_custom_call.1} parent=1 // loop_footer
      %s33 = sadd.s32 1, %s29
    $region7: #{tpu_custom_call.1} parent=1 // loop_footer_branch
      %28 = sbr.rel target = $region3
    $region8: #{tpu_custom_call.1} parent=1 // loop_exit
      _
    %1450 = vsyncpa [#allocation3], 1
    %s1451 = scalar_lea.sflag [#allocation3], 1
    %1452 = vsyncpa %s1451, 1
    %1453 = vsyncpa [#allocation6], 1
    %s1454 = scalar_lea.sflag [#allocation6], 1
    %1455 = vsyncpa %s1454, 1
    %1456 = vsyncpa [#allocation9], 1
    %1457 = vsyncpa [#allocation4], 1
    %s1458 = scalar_lea.sflag [#allocation4], 1
    %1459 = vsyncpa %s1458, 1

</llo_original>
